<compile_context>
chip_gen: v5e
topology: v5e:2x2
jax: 0.10.0
libtpu: 0.0.40
codegen_flags: <defaults>
</compile_context>

<pallas_src>
import functools

import jax
import jax.numpy as jnp
import numpy as np
from jax.experimental import pallas as pl
from jax.experimental.pallas import tpu as pltpu

EPS = 1e-15
LANE = 128                      # lane width; nodes padded to a multiple of this
TM = 128                        # node-row tile (raise to 256 on v5e/v6e for large batches)
VMEM_LIMIT = 48 * 1024 * 1024   # within v7x's 64 MiB physical VMEM; v5e/v6e have 128 MiB


def _round_up(v, m):
    return -(-v // m) * m


# ---------------------------------------------------------------------------
# Host-side (trace-time) window analysis of the block-diagonal batch graph.
# ---------------------------------------------------------------------------
def compute_row_block_windows(src, dst, n_pad, tm, lane=LANE):
    """Per row-block source-column window.

    Graphs in a batch are block-diagonal in the node ordering, so the source
    columns feeding any TM-row destination block span a narrow window.  Returns
    a 128-aligned column offset per row block (int32 [nblk]) and one static
    width W (max over blocks, rounded up to a lane multiple, capped at n_pad).
    # TODO(synk): under jit this table must be precomputed host-side and passed in.
    """
    src = np.asarray(src)
    dst = np.asarray(dst)
    nblk = n_pad // tm
    lo = np.zeros((nblk,), np.int64)
    width = np.full((nblk,), lane, np.int64)
    blk = dst // tm
    for i in range(nblk):
        cols = src[blk == i]
        if cols.size:
            lo[i] = (cols.min() // lane) * lane
            width[i] = cols.max() + 1 - lo[i]
    W = int(min(n_pad, _round_up(int(width.max()), lane)))
    col_off = np.minimum(lo, n_pad - W).astype(np.int32)   # keeps window in-bounds & aligned
    return jnp.asarray(col_off), W


# ---------------------------------------------------------------------------
# Host-side glue: gaussian edge weights + degree-normalized WINDOWED adjacency.
# The data-dependent scatter-add has no clean Pallas-TPU primitive, so it stays
# in XLA; it writes directly into the [n_pad, K*W] layout the kernels consume
# (one fused scatter for both convs, 1/deg folded in, bf16 MXU operands).
# TODO(synk): for very large graphs, replace the dense windowed adjacency with
# fully edge-based aggregation inside Pallas (SMEM src/dst tables).
# ---------------------------------------------------------------------------
def build_adjacencies(edge_attr, src, dst, mu_sigma, col_off, n_pad, tm, W):
    deg = jnp.zeros((n_pad,), jnp.float32).at[dst].add(1.0)
    inv_deg = (1.0 / jnp.maximum(deg, 1.0))[dst][:, None]
    ws = []
    for mu, sigma in mu_sigma:
        diff = edge_attr[:, None, :] - mu[None, :, :]                       # [E, K, D]
        w = jnp.exp(jnp.sum(-0.5 * diff * diff / (EPS + sigma[None, :, :] ** 2), axis=-1))
        ws.append(w * inv_deg)                                              # fold 1/deg(dst)
    w_all = jnp.concatenate(ws, axis=1)                                     # [E, sum_K]
    KT = w_all.shape[1]
    col = src - col_off[dst // tm]                                          # window-local column, in [0, W)
    flat = (dst[:, None] * (KT * W)
            + jnp.arange(KT, dtype=jnp.int32)[None, :] * W
            + col[:, None])                                                 # [E, KT]
    A_all = jnp.zeros((n_pad * KT * W,), jnp.float32).at[flat.reshape(-1)].add(w_all.reshape(-1))
    A_all = A_all.reshape(n_pad, KT, W).astype(jnp.bfloat16)
    out, s = [], 0
    for mu, _ in mu_sigma:
        K = mu.shape[0]
        out.append(A_all[:, s:s + K, :].reshape(n_pad, K * W))              # [n_pad, K*W] bf16
        s += K
    return out


# ---------------------------------------------------------------------------
# Pallas kernels
# ---------------------------------------------------------------------------
def gmm_conv1_kernel(off_ref, a_ref, xg_ref, xr_ref, o_ref, *, K, Cout, W):
    """conv1: out_blk = relu( (x*root + bias)_blk + sum_k A_blk[:, kW:(k+1)W] @ xg[k, win, :] ).

    A_blk is one contiguous (TM, K*W) bf16 slab per step; xg (K, n_pad, Cout)
    bf16 is resident (constant block index -> copied once) and sliced at the
    128-aligned window offset delivered via scalar prefetch.  Padded rows of
    xr are pre-zeroed and their A rows are all-zero, so no in-kernel mask.
    """
    i = pl.program_id(0)
    off = pl.multiple_of(off_ref[i], LANE)
    acc = xr_ref[...]                                                        # f32 [TM, Cout]
    for k in range(K):
        acc = acc + jnp.dot(a_ref[:, pl.ds(k * W, W)],
                            xg_ref[k, pl.ds(off, W), :],
                            preferred_element_type=jnp.float32)
    o_ref[...] = jnp.maximum(acc, 0.0).astype(o_ref.dtype)


def gmm_conv2_pool_kernel(off_ref, a_ref, xg_ref, hr_ref, p_ref, o_ref, *, K, Cout, W):
    """conv2 + relu + per-row-block global_mean_pool partial.

    Emits this block's pooled partial ([B, Cout]) instead of accumulating in
    scratch, so the grid axis is fully 'parallel' (both v7x TensorCores).
    Dropout is identity in eval mode; P has zero columns for padded nodes.
    """
    i = pl.program_id(0)
    off = pl.multiple_of(off_ref[i], LANE)
    acc = hr_ref[...]                                                        # f32 [TM, Cout] = h@root + bias
    for k in range(K):
        acc = acc + jnp.dot(a_ref[:, pl.ds(k * W, W)],
                            xg_ref[k, pl.ds(off, W), :],
                            preferred_element_type=jnp.float32)
    h_blk = jnp.maximum(acc, 0.0)
    o_ref[0] = jnp.dot(p_ref[...], h_blk, preferred_element_type=jnp.float32)


def head_kernel(pp_ref, w1_ref, b1_ref, w2_ref, b2_ref, o_ref):
    """Sum pooled partials + fc1 + relu + fc2 + log_softmax (single step)."""
    pooled = jnp.sum(pp_ref[...], axis=0)                                    # [B, C2]
    h1 = jnp.maximum(jnp.dot(pooled, w1_ref[...],
                             preferred_element_type=jnp.float32) + b1_ref[...], 0.0)
    logits = jnp.dot(h1, w2_ref[...], preferred_element_type=jnp.float32) + b2_ref[...]
    m = jnp.max(logits, axis=1, keepdims=True)
    lse = jnp.log(jnp.sum(jnp.exp(logits - m), axis=1, keepdims=True)) + m
    o_ref[...] = logits - lse


# ---------------------------------------------------------------------------
# pallas_call wrappers
# ---------------------------------------------------------------------------
def gmm_conv1(col_off, A, xg, xr, *, tm, W):
    n_pad, cout = xr.shape
    K = xg.shape[0]
    return pl.pallas_call(
        functools.partial(gmm_conv1_kernel, K=K, Cout=cout, W=W),
        out_shape=jax.ShapeDtypeStruct((n_pad, cout), jnp.bfloat16),
        grid_spec=pltpu.PrefetchScalarGridSpec(
            num_scalar_prefetch=1,                      # per-row-block window offsets (SMEM)
            grid=(n_pad // tm,),
            in_specs=[
                pl.BlockSpec((tm, K * W), lambda i, off: (i, 0)),          # A row slab (contiguous DMA)
                pl.BlockSpec((K, n_pad, cout), lambda i, off: (0, 0, 0)),  # xg, resident (copied once)
                pl.BlockSpec((tm, cout), lambda i, off: (i, 0)),           # x*root + bias (masked)
            ],
            out_specs=pl.BlockSpec((tm, cout), lambda i, off: (i, 0)),
        ),
        compiler_params=pltpu.CompilerParams(
            dimension_semantics=("parallel",),          # row blocks independent -> both TCs on v7x
            vmem_limit_bytes=VMEM_LIMIT),
    )(col_off, A, xg, xr)


def gmm_conv2_pool(col_off, A, xg, hr, P, *, tm, W):
    n_pad, cout = hr.shape
    K = xg.shape[0]
    B = P.shape[0]
    nblk = n_pad // tm
    return pl.pallas_call(
        functools.partial(gmm_conv2_pool_kernel, K=K, Cout=cout, W=W),
        out_shape=jax.ShapeDtypeStruct((nblk, B, cout), jnp.float32),
        grid_spec=pltpu.PrefetchScalarGridSpec(
            num_scalar_prefetch=1,
            grid=(nblk,),
            in_specs=[
                pl.BlockSpec((tm, K * W), lambda i, off: (i, 0)),          # A row slab
                pl.BlockSpec((K, n_pad, cout), lambda i, off: (0, 0, 0)),  # xg, resident
                pl.BlockSpec((tm, cout), lambda i, off: (i, 0)),           # h@root + bias (masked)
                pl.BlockSpec((B, tm), lambda i, off: (0, i)),              # pooling matrix column block
            ],
            out_specs=pl.BlockSpec((1, B, cout), lambda i, off: (i, 0, 0)),
        ),
        compiler_params=pltpu.CompilerParams(
            dimension_semantics=("parallel",),
            vmem_limit_bytes=VMEM_LIMIT),
    )(col_off, A, xg, hr, P)


def mlp_head(pp, w1, b1, w2, b2):
    B = pp.shape[1]
    ncls = w2.shape[1]
    return pl.pallas_call(
        head_kernel,
        out_shape=jax.ShapeDtypeStruct((B, ncls), jnp.float32),
    )(pp, w1, b1.reshape(1, -1), w2, b2.reshape(1, -1))


# ---------------------------------------------------------------------------
# Forward pass
# ---------------------------------------------------------------------------
def gcn_forward(params, x, edge_index, edge_attr, batch, num_graphs):
    N = x.shape[0]
    tm = TM
    n_pad = _round_up(N, max(LANE, tm))
    src, dst = edge_index[0], edge_index[1]

    # Host-side (trace-time) block-diagonal window analysis.
    col_off, W = compute_row_block_windows(src, dst, n_pad, tm)

    # Windowed, degree-normalized adjacencies for both convs (one fused scatter).
    A1, A2 = build_adjacencies(
        edge_attr, src, dst,
        [(params['mu1'], params['sigma1']), (params['mu2'], params['sigma2'])],
        col_off, n_pad, tm, W)

    K1 = params['mu1'].shape[0]
    K2 = params['mu2'].shape[0]
    C1 = params['root1'].shape[1]
    C2 = params['root2'].shape[1]

    rows = jnp.arange(n_pad)[:, None]
    valid = rows < N
    x_pad = jnp.pad(x, ((0, n_pad - N), (0, 0)))                             # [n_pad, 1]

    # conv1 operands precomputed in XLA (Cin = 1 -> outer products, no MXU needed).
    xg1 = (params['g1'].reshape(K1, 1, C1) * x_pad[None, :, :]).astype(jnp.bfloat16)     # [K, n_pad, C1]
    xr1 = jnp.where(valid, x_pad * params['root1'] + params['bias1'], 0.0)               # [n_pad, C1]

    h = gmm_conv1(col_off, A1, xg1, xr1, tm=tm, W=W)                          # bf16 [n_pad, C1]

    # conv2 operands: bf16 MXU matmuls, f32 accumulation, padded rows masked.
    g2 = params['g2'].astype(jnp.bfloat16).reshape(C1, K2, C2)
    root2 = params['root2'].astype(jnp.bfloat16)
    xg2 = jnp.einsum('nc,cko->kno', h, g2,
                     preferred_element_type=jnp.float32).astype(jnp.bfloat16)            # [K, n_pad, C2]
    hr2 = jnp.where(valid, jnp.dot(h, root2, preferred_element_type=jnp.float32)
                    + params['bias2'], 0.0)                                              # [n_pad, C2]

    # Per-graph mean-pool matrix, zero columns for padded nodes (dropout = identity, eval).
    P = (batch[None, :] == jnp.arange(num_graphs, dtype=batch.dtype)[:, None]).astype(jnp.float32)
    P = P / jnp.maximum(P.sum(axis=1, keepdims=True), 1.0)
    P = jnp.pad(P, ((0, 0), (0, n_pad - N)))

    pp = gmm_conv2_pool(col_off, A2, xg2, hr2, P, tm=tm, W=W)                 # [nblk, B, C2]
    return mlp_head(pp, params['fc1_w'], params['fc1_b'], params['fc2_w'], params['fc2_b'])


# ---------------------------------------------------------------------------
# Pure-JAX reference (edge-based, mirrors PyG GMMConv semantics), f32
# ---------------------------------------------------------------------------
def _ref_gmmconv(x, src, dst, eattr, g, mu, sigma, root, bias):
    N = x.shape[0]
    K = mu.shape[0]
    cout = root.shape[1]
    w = jnp.exp(jnp.sum(-0.5 * (eattr[:, None, :] - mu[None]) ** 2
                        / (EPS + sigma[None] ** 2), axis=-1))                # [E, K]
    xg = (x @ g).reshape(N, K, cout)
    msg = jnp.sum(xg[src] * w[:, :, None], axis=1)                           # [E, cout]
    agg = jnp.zeros((N, cout), jnp.float32).at[dst].add(msg)
    deg = jnp.zeros((N,), jnp.float32).at[dst].add(1.0)
    agg = agg / jnp.maximum(deg, 1.0)[:, None]
    return agg + x @ root + bias


def ref_forward(params, x, edge_index, edge_attr, batch, num_graphs):
    src, dst = edge_index[0], edge_index[1]
    h = jax.nn.relu(_ref_gmmconv(x, src, dst, edge_attr, params['g1'], params['mu1'],
                                 params['sigma1'], params['root1'], params['bias1']))
    h = jax.nn.relu(_ref_gmmconv(h, src, dst, edge_attr, params['g2'], params['mu2'],
                                 params['sigma2'], params['root2'], params['bias2']))
    cnt = jnp.zeros((num_graphs,), jnp.float32).at[batch].add(1.0)
    pooled = jnp.zeros((num_graphs, h.shape[1]), jnp.float32).at[batch].add(h)
    pooled = pooled / jnp.maximum(cnt, 1.0)[:, None]
    h1 = jax.nn.relu(pooled @ params['fc1_w'] + params['fc1_b'])
    logits = h1 @ params['fc2_w'] + params['fc2_b']
    return jax.nn.log_softmax(logits, axis=1)


# ---------------------------------------------------------------------------
# Main
# ---------------------------------------------------------------------------
if __name__ == "__main__":
    key = jax.random.PRNGKey(0)
    ks = jax.random.split(key, 20)

    K, DIM = 5, 2
    CIN, C1, C2, HID, NCLS = 1, 64, 128, 64, 10

    params = {
        # GMMConv(1 -> 64, dim=2, kernel_size=5)
        'g1':     0.1 * jax.random.normal(ks[0], (CIN, K * C1), jnp.float32),
        'mu1':    jax.random.uniform(ks[1], (K, DIM), jnp.float32),
        'sigma1': 1.0 + 0.1 * jax.random.normal(ks[2], (K, DIM), jnp.float32),
        'root1':  0.1 * jax.random.normal(ks[3], (CIN, C1), jnp.float32),
        'bias1':  0.1 * jax.random.normal(ks[4], (C1,), jnp.float32),
        # GMMConv(64 -> 128, dim=2, kernel_size=5)
        'g2':     0.1 * jax.random.normal(ks[5], (C1, K * C2), jnp.float32),
        'mu2':    jax.random.uniform(ks[6], (K, DIM), jnp.float32),
        'sigma2': 1.0 + 0.1 * jax.random.normal(ks[7], (K, DIM), jnp.float32),
        'root2':  0.1 * jax.random.normal(ks[8], (C1, C2), jnp.float32),
        'bias2':  0.1 * jax.random.normal(ks[9], (C2,), jnp.float32),
        # fc1 (128 -> 64), fc2 (64 -> 10); stored as [in, out]
        'fc1_w':  0.1 * jax.random.normal(ks[10], (C2, HID), jnp.float32),
        'fc1_b':  0.1 * jax.random.normal(ks[11], (HID,), jnp.float32),
        'fc2_w':  0.1 * jax.random.normal(ks[12], (HID, NCLS), jnp.float32),
        'fc2_b':  0.1 * jax.random.normal(ks[13], (NCLS,), jnp.float32),
    }

    # Synthetic mini-batch: 6 graphs x 75 nodes (MNIST-superpixel-sized graphs),
    # bidirectional ring edges.  N = 450 -> n_pad = 512 -> 4 row blocks; the
    # block-diagonal window analysis yields W < n_pad (windowed A layout).
    num_graphs, nodes_per_graph = 6, 75
    N = num_graphs * nodes_per_graph
    src_l, dst_l = [], []
    for g in range(num_graphs):
        for i in range(nodes_per_graph):
            a = g * nodes_per_graph + i
            b = g * nodes_per_graph + (i + 1) % nodes_per_graph
            src_l += [a, b]
            dst_l += [b, a]
    edge_index = jnp.array([src_l, dst_l], jnp.int32)      # [2, E]
    E = edge_index.shape[1]

    x = jax.random.uniform(ks[14], (N, CIN), jnp.float32)            # node features
    edge_attr = jax.random.uniform(ks[15], (E, DIM), jnp.float32)    # pseudo-coordinates
    batch = jnp.repeat(jnp.arange(num_graphs, dtype=jnp.int32), nodes_per_graph)

    out = gcn_forward(params, x, edge_index, edge_attr, batch, num_graphs)
    out = jax.block_until_ready(out)

    ref = ref_forward(params, x, edge_index, edge_attr, batch, num_graphs)
    # Tolerance accounts for bf16 A / xg / h / g2 / root2 MXU operands (f32 accumulation).
    np.testing.assert_allclose(np.asarray(out), np.asarray(ref), rtol=2e-2, atol=2e-2)

    print("KERNEL_OK")
</pallas_src>

<mosaic_0001>
module attributes {stable_mosaic.version = 11 : i64} {
  func.func @gmm_conv1_kernel(%arg0: i32, %arg1: memref<4xi32, #tpu.memory_space<smem>>, %arg2: memref<128x1920xbf16, #tpu.memory_space<vmem>>, %arg3: memref<5x512x64xbf16, #tpu.memory_space<vmem>>, %arg4: memref<128x64xf32, #tpu.memory_space<vmem>>, %arg5: memref<128x64xbf16, #tpu.memory_space<vmem>>) attributes {dimension_semantics = [#tpu.dimension_semantics<parallel>], iteration_bounds = array<i64: 4>, scalar_prefetch = 1 : i64, scratch_operands = 0 : i64, tpu.core_type = #tpu.core_type<tc>, window_params = [{transform_indices = @transform_0, window_bounds = array<i64: 128, 1920>}, {pipeline_mode = #tpu.pipeline_mode<synchronous>, transform_indices = @transform_1, window_bounds = array<i64: 5, 512, 64>}, {transform_indices = @transform_2, window_bounds = array<i64: 128, 64>}, {transform_indices = @transform_3, window_bounds = array<i64: 128, 64>}]} {
    %0 = arith.index_cast %arg0 : i32 to index
    %1 = memref.load %arg1[%0] : memref<4xi32, #tpu.memory_space<smem>>
    %2 = tpu.assume_multiple %1, 128 : i32
    %c0 = arith.constant 0 : index
    %c0_0 = arith.constant 0 : index
    %3 = vector.load %arg4[%c0, %c0_0] : memref<128x64xf32, #tpu.memory_space<vmem>>, vector<128x64xf32>
    %c0_1 = arith.constant 0 : index
    %c0_2 = arith.constant 0 : index
    %4 = vector.load %arg2[%c0_1, %c0_2] : memref<128x1920xbf16, #tpu.memory_space<vmem>>, vector<128x384xbf16>
    %c0_3 = arith.constant 0 : index
    %5 = arith.index_cast %2 : i32 to index
    %c0_4 = arith.constant 0 : index
    %6 = vector.load %arg3[%c0_3, %5, %c0_4] : memref<5x512x64xbf16, #tpu.memory_space<vmem>>, vector<1x384x64xbf16>
    %7 = vector.shape_cast %6 : vector<1x384x64xbf16> to vector<384x64xbf16>
    %cst = arith.constant dense<0.000000e+00> : vector<128x64xf32>
    %8 = tpu.matmul %4, %7, %cst {dimension_numbers = #tpu.dot_dimension_numbers<[1], [0], [0], [1], [0, 0, 1, 1], [], []>} : vector<128x384xbf16>, vector<384x64xbf16>, vector<128x64xf32> -> vector<128x64xf32>
    %9 = arith.addf %3, %8 : vector<128x64xf32>
    %c0_5 = arith.constant 0 : index
    %c384 = arith.constant 384 : index
    %10 = vector.load %arg2[%c0_5, %c384] : memref<128x1920xbf16, #tpu.memory_space<vmem>>, vector<128x384xbf16>
    %c1 = arith.constant 1 : index
    %11 = arith.index_cast %2 : i32 to index
    %c0_6 = arith.constant 0 : index
    %12 = vector.load %arg3[%c1, %11, %c0_6] : memref<5x512x64xbf16, #tpu.memory_space<vmem>>, vector<1x384x64xbf16>
    %13 = vector.shape_cast %12 : vector<1x384x64xbf16> to vector<384x64xbf16>
    %cst_7 = arith.constant dense<0.000000e+00> : vector<128x64xf32>
    %14 = tpu.matmul %10, %13, %cst_7 {dimension_numbers = #tpu.dot_dimension_numbers<[1], [0], [0], [1], [0, 0, 1, 1], [], []>} : vector<128x384xbf16>, vector<384x64xbf16>, vector<128x64xf32> -> vector<128x64xf32>
    %15 = arith.addf %9, %14 : vector<128x64xf32>
    %c0_8 = arith.constant 0 : index
    %c768 = arith.constant 768 : index
    %16 = vector.load %arg2[%c0_8, %c768] : memref<128x1920xbf16, #tpu.memory_space<vmem>>, vector<128x384xbf16>
    %c2 = arith.constant 2 : index
    %17 = arith.index_cast %2 : i32 to index
    %c0_9 = arith.constant 0 : index
    %18 = vector.load %arg3[%c2, %17, %c0_9] : memref<5x512x64xbf16, #tpu.memory_space<vmem>>, vector<1x384x64xbf16>
    %19 = vector.shape_cast %18 : vector<1x384x64xbf16> to vector<384x64xbf16>
    %cst_10 = arith.constant dense<0.000000e+00> : vector<128x64xf32>
    %20 = tpu.matmul %16, %19, %cst_10 {dimension_numbers = #tpu.dot_dimension_numbers<[1], [0], [0], [1], [0, 0, 1, 1], [], []>} : vector<128x384xbf16>, vector<384x64xbf16>, vector<128x64xf32> -> vector<128x64xf32>
    %21 = arith.addf %15, %20 : vector<128x64xf32>
    %c0_11 = arith.constant 0 : index
    %c1152 = arith.constant 1152 : index
    %22 = vector.load %arg2[%c0_11, %c1152] : memref<128x1920xbf16, #tpu.memory_space<vmem>>, vector<128x384xbf16>
    %c3 = arith.constant 3 : index
    %23 = arith.index_cast %2 : i32 to index
    %c0_12 = arith.constant 0 : index
    %24 = vector.load %arg3[%c3, %23, %c0_12] : memref<5x512x64xbf16, #tpu.memory_space<vmem>>, vector<1x384x64xbf16>
    %25 = vector.shape_cast %24 : vector<1x384x64xbf16> to vector<384x64xbf16>
    %cst_13 = arith.constant dense<0.000000e+00> : vector<128x64xf32>
    %26 = tpu.matmul %22, %25, %cst_13 {dimension_numbers = #tpu.dot_dimension_numbers<[1], [0], [0], [1], [0, 0, 1, 1], [], []>} : vector<128x384xbf16>, vector<384x64xbf16>, vector<128x64xf32> -> vector<128x64xf32>
    %27 = arith.addf %21, %26 : vector<128x64xf32>
    %c0_14 = arith.constant 0 : index
    %c1536 = arith.constant 1536 : index
    %28 = vector.load %arg2[%c0_14, %c1536] : memref<128x1920xbf16, #tpu.memory_space<vmem>>, vector<128x384xbf16>
    %c4 = arith.constant 4 : index
    %29 = arith.index_cast %2 : i32 to index
    %c0_15 = arith.constant 0 : index
    %30 = vector.load %arg3[%c4, %29, %c0_15] : memref<5x512x64xbf16, #tpu.memory_space<vmem>>, vector<1x384x64xbf16>
    %31 = vector.shape_cast %30 : vector<1x384x64xbf16> to vector<384x64xbf16>
    %cst_16 = arith.constant dense<0.000000e+00> : vector<128x64xf32>
    %32 = tpu.matmul %28, %31, %cst_16 {dimension_numbers = #tpu.dot_dimension_numbers<[1], [0], [0], [1], [0, 0, 1, 1], [], []>} : vector<128x384xbf16>, vector<384x64xbf16>, vector<128x64xf32> -> vector<128x64xf32>
    %33 = arith.addf %27, %32 : vector<128x64xf32>
    %cst_17 = arith.constant 0.000000e+00 : f32
    %34 = vector.broadcast %cst_17 : f32 to vector<128x64xf32>
    %35 = arith.maximumf %33, %34 : vector<128x64xf32>
    %36 = arith.truncf %35 : vector<128x64xf32> to vector<128x64xbf16>
    %c0_18 = arith.constant 0 : index
    %c0_19 = arith.constant 0 : index
    %37 = vector.load %arg5[%c0_18, %c0_19] : memref<128x64xbf16, #tpu.memory_space<vmem>>, vector<128x64xbf16>
    tpu.vector_store %arg5[%c0_18, %c0_19], %36 {strides = array<i32>} : memref<128x64xbf16, #tpu.memory_space<vmem>>, vector<128x64xbf16>,
    return
  }
  func.func @transform_0(%arg0: i32, %arg1: memref<4xi32, #tpu.memory_space<smem>>) -> (i32, i32) {
    %c0_i32 = arith.constant 0 : i32
    %c0_i32_0 = arith.constant 0 : i32
    return %arg0, %c0_i32 : i32, i32
  }
  func.func @transform_1(%arg0: i32, %arg1: memref<4xi32, #tpu.memory_space<smem>>) -> (i32, i32, i32) {
    %c0_i32 = arith.constant 0 : i32
    %c0_i32_0 = arith.constant 0 : i32
    %c0_i32_1 = arith.constant 0 : i32
    %c0_i32_2 = arith.constant 0 : i32
    return %c0_i32, %c0_i32_0, %c0_i32_1 : i32, i32, i32
  }
  func.func @transform_2(%arg0: i32, %arg1: memref<4xi32, #tpu.memory_space<smem>>) -> (i32, i32) {
    %c0_i32 = arith.constant 0 : i32
    %c0_i32_0 = arith.constant 0 : i32
    return %arg0, %c0_i32 : i32, i32
  }
  func.func @transform_3(%arg0: i32, %arg1: memref<4xi32, #tpu.memory_space<smem>>) -> (i32, i32) {
    %c0_i32 = arith.constant 0 : i32
    %c0_i32_0 = arith.constant 0 : i32
    return %arg0, %c0_i32 : i32, i32
  }
}

</mosaic_0001>

<llo_original>
// kernel: tpu_custom_call.1
$region0: #{tpu_custom_call.1}
  #allocation0 [shape = 'u32[]', space=smem, size = 0x4, offset = 0x4, fixed_abs, tag = 'smem constant byte address 0x4 - core index']
  #allocation1 [shape = 'u32[72,128]{1,0:T(1,128)}', space=vmem, size = 0x9000, scoped, tag = 'internal scratch']
  #allocation2 [shape = 's32[1]{0}', space=sflag, size = 0x4, scoped, tag = 'scoped memory for tpu_custom_call.1']
  #allocation3 [shape = 'u8[512]{0}', space=smem, size = 0x200, scoped, tag = 'prefetched SMEM operand 0']
  %s0 = inlined_call_operand.hbm [shape: s32[4], index: 0, kind: input, shape index: {}]
  %s1 = inlined_call_operand.hbm [shape: bf16[512,1920], index: 1, kind: input, shape index: {}]
  %s2 = inlined_call_operand.vmem [shape: bf16[5,512,64], index: 2, kind: input, shape index: {}]
  %s3 = inlined_call_operand.vmem [shape: f32[512,64], index: 3, kind: input, shape index: {}]
  %s4 = inlined_call_operand.vmem [shape: bf16[512,64], index: 4, kind: output, shape index: {}]
  %s5 = sld [smem:[#allocation0]]
  $region49: #{tpu_custom_call.1} parent=0
    _
  %s7 = ssub.s32 1, %s5
  %s8 = scalar_select 0, %s7, %s5
  %s10 = sshll.u32 %s0, 4
  %s11 = int_to_ptr.hbm [resolvable:$true] %s10
  %13 = dma.hbm_to_smem %s11, 16, [#allocation3], [#allocation2]
  %15 = dma.done [#allocation2], 16
  %16 = sfence
  $region1: #{tpu_custom_call.1} parent=0
    #allocation4 [shape = 'u8[983040]{0}', space=vmem, size = 0xf0000, scoped, tag = 'input window, operand 1']
    #allocation5 [shape = 's32[2]{0}', space=sflag, size = 0x8, scoped, tag = 'scoped memory for tpu_custom_call.1']
    %17 = vsyncpa [#allocation5], 0
    %s18 = scalar_lea.sflag [#allocation5], 1
    %19 = vsyncpa %s18, 0
    loop: start=0, step=1, limit=6
    $region2: #{tpu_custom_call.1} parent=1 // loop_pre_header
      _
    $region3: #{tpu_custom_call.1} parent=1 // loop_header
      %s21 = sphi 0, %s25
      %p22 = scmp.ge.s32.totalorder %s21, 6
      %s31 = sphi 0, %s33
      %s34 = sphi 0, %s31
      %s35 = sphi 0, %s34
      %s51 = sphi 0, %s35
      %s55 = sphi 0, %s55
      %s57 = sphi 0, %s55
      %s58 = sphi 0, %s57
      %s72 = sphi 0, %s58
      %s78 = sphi 0, %s80
      %s81 = sphi 0, %s78
      %s82 = sphi 0, %s81
      %s98 = sphi 0, %s82
      %s104 = sphi 0, %s106
      %s107 = sphi 0, %s104
      %s108 = sphi 0, %s107
      %s124 = sphi 0, %s108
    $region4: #{tpu_custom_call.1} parent=1 // loop_header_branch
      %24 = sbr.rel (%p22) target = $region8
    $region5: #{tpu_custom_call.1} parent=1 // loop_body
      %s26 = ssub.s32 %s21, 1
      %s27 = ssub.s32 %s21, 2
      %s28 = sadd.s32 %s21, 1
      %s29 = ssub.s32 %s21, %s28
      %p30 = scmp.eq.s32.totalorder %s29, 0
      %s32 = sadd.s32 %s31, 1
      %s33 = scalar_select %p30, %s31, %s32
      %p36 = pneg %p30
      %p37 = scmp.eq.s32.totalorder %s21, 3
      %p38 = por %p36, %p37
      %p39 = scmp.ne.s32.totalorder %s31, %s34
      %p40 = scmp.eq.s32.totalorder %s21, 0
      %p41 = por %p39, %p40
      %p42 = scmp.ne.s32.totalorder %s31, %s34
      %p43 = scmp.eq.s32.totalorder %s26, 3
      %p44 = por %p42, %p43
      %p45 = scmp.ne.s32.totalorder %s34, %s35
      %p46 = scmp.eq.s32.totalorder %s26, 0
      %p47 = por %p45, %p46
      %p48 = scmp.ne.s32.totalorder %s34, %s35
      %p49 = scmp.eq.s32.totalorder %s27, 3
      %p50 = por %p48, %p49
      %p52 = scmp.ne.s32.totalorder %s35, %s51
      %p53 = scmp.eq.s32.totalorder %s27, 0
      %p54 = por %p52, %p53
      %s56 = sadd.s32 %s55, 1
      %p59 = scmp.eq.s32.totalorder %s21, 3
      %p60 = scmp.ne.s32.totalorder %s55, %s57
      %p61 = scmp.eq.s32.totalorder %s21, 0
      %p62 = por %p60, %p61
      %p63 = scmp.ne.s32.totalorder %s55, %s57
      %p64 = scmp.eq.s32.totalorder %s26, 3
      %p65 = por %p63, %p64
      %p66 = scmp.ne.s32.totalorder %s57, %s58
      %p67 = scmp.eq.s32.totalorder %s26, 0
      %p68 = por %p66, %p67
      %p69 = scmp.ne.s32.totalorder %s57, %s58
      %p70 = scmp.eq.s32.totalorder %s27, 3
      %p71 = por %p69, %p70
      %p73 = scmp.ne.s32.totalorder %s58, %s72
      %p74 = scmp.eq.s32.totalorder %s27, 0
      %p75 = por %p73, %p74
      %s76 = ssub.s32 %s21, %s28
      %p77 = scmp.eq.s32.totalorder %s76, 0
      %s79 = sadd.s32 %s78, 1
      %s80 = scalar_select %p77, %s78, %s79
      %p83 = pneg %p77
      %p84 = scmp.eq.s32.totalorder %s21, 3
      %p85 = por %p83, %p84
      %p86 = scmp.ne.s32.totalorder %s78, %s81
      %p87 = scmp.eq.s32.totalorder %s21, 0
      %p88 = por %p86, %p87
      %p89 = scmp.ne.s32.totalorder %s78, %s81
      %p90 = scmp.eq.s32.totalorder %s26, 3
      %p91 = por %p89, %p90
      %p92 = scmp.ne.s32.totalorder %s81, %s82
      %p93 = scmp.eq.s32.totalorder %s26, 0
      %p94 = por %p92, %p93
      %p95 = scmp.ne.s32.totalorder %s81, %s82
      %p96 = scmp.eq.s32.totalorder %s27, 3
      %p97 = por %p95, %p96
      %p99 = scmp.ne.s32.totalorder %s82, %s98
      %p100 = scmp.eq.s32.totalorder %s27, 0
      %p101 = por %p99, %p100
      %s102 = ssub.s32 %s21, %s28
      %p103 = scmp.eq.s32.totalorder %s102, 0
      %s105 = sadd.s32 %s104, 1
      %s106 = scalar_select %p103, %s104, %s105
      %p109 = pneg %p103
      %p110 = scmp.eq.s32.totalorder %s21, 3
      %p111 = por %p109, %p110
      %p112 = scmp.ne.s32.totalorder %s104, %s107
      %p113 = scmp.eq.s32.totalorder %s21, 0
      %p114 = por %p112, %p113
      %p115 = scmp.ne.s32.totalorder %s104, %s107
      %p116 = scmp.eq.s32.totalorder %s26, 3
      %p117 = por %p115, %p116
      %p118 = scmp.ne.s32.totalorder %s107, %s108
      %p119 = scmp.eq.s32.totalorder %s26, 0
      %p120 = por %p118, %p119
      %p121 = scmp.ne.s32.totalorder %s107, %s108
      %p122 = scmp.eq.s32.totalorder %s27, 3
      %p123 = por %p121, %p122
      %p125 = scmp.ne.s32.totalorder %s108, %s124
      %p126 = scmp.eq.s32.totalorder %s27, 0
      %p127 = por %p125, %p126
      %p128 = scmp.le.s32.totalorder 1, %s21
      %p129 = scmp.lt.s32.totalorder %s21, 5
      %p130 = pnand %p128, %p129
      %p131 = pneg %p130
      // Predicated region
      $region9: #{tpu_custom_call.1} parent=5 // pred_check
        _
      $region10: #{tpu_custom_call.1} parent=5 // pred_check_branch
        %133 = sbr.rel (%p130) target = $region12
      $region11: #{tpu_custom_call.1} parent=5 // pred_region
        %s134 = ssub.s32 %s21, 1
        // Predicated region
        $region13: #{tpu_custom_call.1} parent=11 // pred_check
          %p135 = pneg %p68
        $region14: #{tpu_custom_call.1} parent=11 // pred_check_branch
          %137 = sbr.rel (%p135) target = $region16
        $region15: #{tpu_custom_call.1} parent=11 // pred_region
          _
        $region16: #{tpu_custom_call.1} parent=11 // pred_fallthru
          _
      $region12: #{tpu_custom_call.1} parent=5 // pred_fallthru
        _
      %p138 = scmp.lt.s32.totalorder %s21, 4
      // Predicated region
      $region17: #{tpu_custom_call.1} parent=5 // pred_check
        %p139 = pneg %p138
      $region18: #{tpu_custom_call.1} parent=5 // pred_check_branch
        %141 = sbr.rel (%p139) target = $region20
      $region19: #{tpu_custom_call.1} parent=5 // pred_region
        // Predicated region
        $region21: #{tpu_custom_call.1} parent=19 // pred_check
          %p142 = pneg %p41
        $region22: #{tpu_custom_call.1} parent=19 // pred_check_branch
          %144 = sbr.rel (%p142) target = $region24
        $region23: #{tpu_custom_call.1} parent=19 // pred_region
          %s145 = sand.u32 %s31, 1
          %s146 = scalar_lea.sflag [#allocation5], %s145
          %s147 = sand.u32 %s31, 1
          %s148 = smul.addr %s147, 960
          %s149 = scalar_lea.vmem [#allocation4], %s148
          %s150 = smul.u32 16, %s21
          %152 = vsyncadd %s146, 0
          %s153 = smul.addr %s150, 15
          %s154 = smul.addr %s153, 4
          %s155 = scalar_lea.hbm %s1, %s154
          %s156 = sshll.u32 %s155, 4
          %s157 = int_to_ptr.hbm [resolvable:$true] %s156
          %s158 = sshll.u32 %s149, 4
          %s159 = int_to_ptr.vmem [resolvable:$true] %s158
          %164 = dma.hbm_to_vmem [thread:$0]  %s157, 15360, %s159, %s146, 960, 960, 60
        $region24: #{tpu_custom_call.1} parent=19 // pred_fallthru
          _
        // Predicated region
        $region25: #{tpu_custom_call.1} parent=19 // pred_check
          %p165 = pneg %p88
        $region26: #{tpu_custom_call.1} parent=19 // pred_check_branch
          %167 = sbr.rel (%p165) target = $region28
        $region27: #{tpu_custom_call.1} parent=19 // pred_region
          %s168 = smul.u32 16, %s21
          %p169 = scmp.lt.s32.totalorder %s168, 63
          %s170 = scalar_select %p169, %s168, 63
          %s171 = smul.addr %s170, 8
          %s172 = scalar_lea.vmem %s3, %s171
          %s173 = smul.u32 16, %s21
        $region28: #{tpu_custom_call.1} parent=19 // pred_fallthru
          _
      $region20: #{tpu_custom_call.1} parent=5 // pred_fallthru
        _
      %p174 = scmp.le.s32.totalorder 1, %s21
      %p175 = scmp.lt.s32.totalorder %s21, 5
      %p176 = pnand %p174, %p175
      %p177 = pneg %p176
      // Predicated region
      $region29: #{tpu_custom_call.1} parent=5 // pred_check
        _
      $region30: #{tpu_custom_call.1} parent=5 // pred_check_branch
        %179 = sbr.rel (%p176) target = $region32
      $region31: #{tpu_custom_call.1} parent=5 // pred_region
        %s180 = ssub.s32 %s21, 1
        %s181 = sand.u32 %s34, 1
        %s182 = scalar_lea.sflag [#allocation5], %s181
        %s183 = sand.u32 %s34, 1
        %s184 = smul.addr %s183, 960
        %s185 = scalar_lea.vmem [#allocation4], %s184
        // Predicated region
        $region33: #{tpu_custom_call.1} parent=31 // pred_check
          %p186 = pneg %p47
        $region34: #{tpu_custom_call.1} parent=31 // pred_check_branch
          %188 = sbr.rel (%p186) target = $region36
        $region35: #{tpu_custom_call.1} parent=31 // pred_region
          %190 = dma.done %s182, 15360
        $region36: #{tpu_custom_call.1} parent=31 // pred_fallthru
          _
        %s191 = sand.u32 %s34, 1
        %s192 = scalar_lea.sflag [#allocation5], %s191
        %s193 = sand.u32 %s34, 1
        %s194 = smul.addr %s193, 960
        %s195 = scalar_lea.vmem [#allocation4], %s194
        %p196 = pneg %p47
        %p197 = pneg %p44
        %p198 = pneg %p68
        %p199 = pneg %p65
        %s200 = smul.u32 16, %s26
        %p201 = scmp.lt.s32.totalorder %s200, 63
        %s202 = scalar_select %p201, %s200, 63
        %s203 = smul.addr %s202, 8
        %s204 = scalar_lea.vmem %s3, %s203
        %p205 = pneg %p94
        %p206 = pneg %p91
        %p207 = pneg %p120
        %p208 = pneg %p117
        %s209 = smul.u32 16, %s26
        %p210 = scmp.lt.s32.totalorder %s209, 63
        %s211 = scalar_select %p210, %s209, 63
        %s212 = smul.addr %s211, 4
        %s213 = scalar_lea.vmem %s4, %s212
        %s214 = smul.u32 16, %s26
        %s215 = smul.u32 16, %s26
        %p216 = scmp.lt.s32.totalorder %s215, 63
        %s217 = scalar_select %p216, %s215, 63
        %s218 = smul.addr %s217, 8
        %s219 = scalar_lea.vmem %s3, %s218
        %s220 = smul.u32 16, %s26
        %s221 = smul.u32 16, %s26
        %p222 = scmp.lt.s32.totalorder %s221, 63
        %s223 = scalar_select %p222, %s221, 63
        %s224 = smul.addr %s223, 4
        %s225 = scalar_lea.vmem %s4, %s224
        %s226 = smul.u32 16, %s26
        %s227 = sld [smem:[#allocation3 + %s26]]
        %v228 = vld [vmem:[%s219] sm:$0xff]
        %v229 = vld [vmem:[%s219 + $0x8] sm:$0xff]
        %v230 = vld [vmem:[%s219 + $0x10] sm:$0xff]
        %v231 = vld [vmem:[%s219 + $0x18] sm:$0xff]
        %v232 = vld [vmem:[%s219 + $0x20] sm:$0xff]
        %v233 = vld [vmem:[%s219 + $0x28] sm:$0xff]
        %v234 = vld [vmem:[%s219 + $0x30] sm:$0xff]
        %v235 = vld [vmem:[%s219 + $0x38] sm:$0xff]
        %v236 = vld [vmem:[%s219 + $0x40] sm:$0xff]
        %v237 = vld [vmem:[%s219 + $0x48] sm:$0xff]
        %v238 = vld [vmem:[%s219 + $0x50] sm:$0xff]
        %v239 = vld [vmem:[%s219 + $0x58] sm:$0xff]
        %v240 = vld [vmem:[%s219 + $0x60] sm:$0xff]
        %v241 = vld [vmem:[%s219 + $0x68] sm:$0xff]
        %v242 = vld [vmem:[%s219 + $0x70] sm:$0xff]
        %v243 = vld [vmem:[%s219 + $0x78] sm:$0xff]
        %v244 = vld [vmem:[%s185] sm:$0xff]
        %v245 = vld [vmem:[%s185 + $0x8] sm:$0xf]
        %v246 = vld [vmem:[%s185 + $0x3c] sm:$0xff]
        %v247 = vld [vmem:[%s185 + $0x44] sm:$0xf]
        %v248 = vld [vmem:[%s185 + $0x78] sm:$0xff]
        %v249 = vld [vmem:[%s185 + $0x80] sm:$0xf]
        %v250 = vld [vmem:[%s185 + $0xb4] sm:$0xff]
        %v251 = vld [vmem:[%s185 + $0xbc] sm:$0xf]
        %v252 = vld [vmem:[%s185 + $0xf0] sm:$0xff]
        %v253 = vld [vmem:[%s185 + $0xf8] sm:$0xf]
        %v254 = vld [vmem:[%s185 + $0x12c] sm:$0xff]
        %v255 = vld [vmem:[%s185 + $0x134] sm:$0xf]
        %v256 = vld [vmem:[%s185 + $0x168] sm:$0xff]
        %v257 = vld [vmem:[%s185 + $0x170] sm:$0xf]
        %v258 = vld [vmem:[%s185 + $0x1a4] sm:$0xff]
        %v259 = vld [vmem:[%s185 + $0x1ac] sm:$0xf]
        %v260 = vld [vmem:[%s185 + $0x1e0] sm:$0xff]
        %v261 = vld [vmem:[%s185 + $0x1e8] sm:$0xf]
        %v262 = vld [vmem:[%s185 + $0x21c] sm:$0xff]
        %v263 = vld [vmem:[%s185 + $0x224] sm:$0xf]
        %v264 = vld [vmem:[%s185 + $0x258] sm:$0xff]
        %v265 = vld [vmem:[%s185 + $0x260] sm:$0xf]
        %v266 = vld [vmem:[%s185 + $0x294] sm:$0xff]
        %v267 = vld [vmem:[%s185 + $0x29c] sm:$0xf]
        %v268 = vld [vmem:[%s185 + $0x2d0] sm:$0xff]
        %v269 = vld [vmem:[%s185 + $0x2d8] sm:$0xf]
        %v270 = vld [vmem:[%s185 + $0x30c] sm:$0xff]
        %v271 = vld [vmem:[%s185 + $0x314] sm:$0xf]
        %v272 = vld [vmem:[%s185 + $0x348] sm:$0xff]
        %v273 = vld [vmem:[%s185 + $0x350] sm:$0xf]
        %v274 = vld [vmem:[%s185 + $0x384] sm:$0xff]
        %v275 = vld [vmem:[%s185 + $0x38c] sm:$0xf]
        %s276 = sshra.s32 %s227, 3
        %s277 = sand.u32 %s227, 7
        %s278 = smul.addr %s276, 4
        %s279 = scalar_lea.vmem %s2, %s278
        %v280 = vld [vmem:[%s279] sm:$0xf]
        %v281 = vld [vmem:[%s279 + $0x4] sm:$0xf]
        %v282 = vld [vmem:[%s279 + $0x8] sm:$0xf]
        %v283 = vld [vmem:[%s279 + $0xc] sm:$0xf]
        %v284 = vld [vmem:[%s279 + $0x10] sm:$0xf]
        %v285 = vld [vmem:[%s279 + $0x14] sm:$0xf]
        %v286 = vld [vmem:[%s279 + $0x18] sm:$0xf]
        %v287 = vld [vmem:[%s279 + $0x1c] sm:$0xf]
        %v288 = vld [vmem:[%s279 + $0x20] sm:$0xf]
        %v289 = vld [vmem:[%s279 + $0x24] sm:$0xf]
        %v290 = vld [vmem:[%s279 + $0x28] sm:$0xf]
        %v291 = vld [vmem:[%s279 + $0x2c] sm:$0xf]
        %v292 = vld [vmem:[%s279 + $0x30] sm:$0xf]
        %v293 = vld [vmem:[%s279 + $0x34] sm:$0xf]
        %v294 = vld [vmem:[%s279 + $0x38] sm:$0xf]
        %v295 = vld [vmem:[%s279 + $0x3c] sm:$0xf]
        %v296 = vld [vmem:[%s279 + $0x40] sm:$0xf]
        %v297 = vld [vmem:[%s279 + $0x44] sm:$0xf]
        %v298 = vld [vmem:[%s279 + $0x48] sm:$0xf]
        %v299 = vld [vmem:[%s279 + $0x4c] sm:$0xf]
        %v300 = vld [vmem:[%s279 + $0x50] sm:$0xf]
        %v301 = vld [vmem:[%s279 + $0x54] sm:$0xf]
        %v302 = vld [vmem:[%s279 + $0x58] sm:$0xf]
        %v303 = vld [vmem:[%s279 + $0x5c] sm:$0xf]
        %v304 = vld [vmem:[%s279 + $0x60] sm:$0xf]
        %v305 = vld [vmem:[%s279 + $0x64] sm:$0xf]
        %v306 = vld [vmem:[%s279 + $0x68] sm:$0xf]
        %v307 = vld [vmem:[%s279 + $0x6c] sm:$0xf]
        %v308 = vld [vmem:[%s279 + $0x70] sm:$0xf]
        %v309 = vld [vmem:[%s279 + $0x74] sm:$0xf]
        %v310 = vld [vmem:[%s279 + $0x78] sm:$0xf]
        %v311 = vld [vmem:[%s279 + $0x7c] sm:$0xf]
        %v312 = vld [vmem:[%s279 + $0x80] sm:$0xf]
        %v313 = vld [vmem:[%s279 + $0x84] sm:$0xf]
        %v314 = vld [vmem:[%s279 + $0x88] sm:$0xf]
        %v315 = vld [vmem:[%s279 + $0x8c] sm:$0xf]
        %v316 = vld [vmem:[%s279 + $0x90] sm:$0xf]
        %v317 = vld [vmem:[%s279 + $0x94] sm:$0xf]
        %v318 = vld [vmem:[%s279 + $0x98] sm:$0xf]
        %v319 = vld [vmem:[%s279 + $0x9c] sm:$0xf]
        %v320 = vld [vmem:[%s279 + $0xa0] sm:$0xf]
        %v321 = vld [vmem:[%s279 + $0xa4] sm:$0xf]
        %v322 = vld [vmem:[%s279 + $0xa8] sm:$0xf]
        %v323 = vld [vmem:[%s279 + $0xac] sm:$0xf]
        %v324 = vld [vmem:[%s279 + $0xb0] sm:$0xf]
        %v325 = vld [vmem:[%s279 + $0xb4] sm:$0xf]
        %v326 = vld [vmem:[%s279 + $0xb8] sm:$0xf]
        %v327 = vld [vmem:[%s279 + $0xbc] sm:$0xf]
        %v360 = vunpack.c.l.b16 %v244
        %v361 = vunpack.c.h.b16 %v244
        %v362 = vunpack.c.l.b16 %v245
        %v363 = vunpack.c.l.b16 %v246
        %v364 = vunpack.c.h.b16 %v246
        %v365 = vunpack.c.l.b16 %v247
        %v366 = vunpack.c.l.b16 %v248
        %v367 = vunpack.c.h.b16 %v248
        %v368 = vunpack.c.l.b16 %v249
        %v369 = vunpack.c.l.b16 %v250
        %v370 = vunpack.c.h.b16 %v250
        %v371 = vunpack.c.l.b16 %v251
        %v372 = vunpack.c.l.b16 %v252
        %v373 = vunpack.c.h.b16 %v252
        %v374 = vunpack.c.l.b16 %v253
        %v375 = vunpack.c.l.b16 %v254
        %v376 = vunpack.c.h.b16 %v254
        %v377 = vunpack.c.l.b16 %v255
        %v378 = vunpack.c.l.b16 %v256
        %v379 = vunpack.c.h.b16 %v256
        %v380 = vunpack.c.l.b16 %v257
        %v381 = vunpack.c.l.b16 %v258
        %v382 = vunpack.c.h.b16 %v258
        %v383 = vunpack.c.l.b16 %v259
        %v384 = vunpack.c.l.b16 %v260
        %v385 = vunpack.c.h.b16 %v260
        %v386 = vunpack.c.l.b16 %v261
        %v387 = vunpack.c.l.b16 %v262
        %v388 = vunpack.c.h.b16 %v262
        %v389 = vunpack.c.l.b16 %v263
        %v390 = vunpack.c.l.b16 %v264
        %v391 = vunpack.c.h.b16 %v264
        %v392 = vunpack.c.l.b16 %v265
        %v393 = vunpack.c.l.b16 %v266
        %v394 = vunpack.c.h.b16 %v266
        %v395 = vunpack.c.l.b16 %v267
        %v396 = vunpack.c.l.b16 %v268
        %v397 = vunpack.c.h.b16 %v268
        %v398 = vunpack.c.l.b16 %v269
        %v399 = vunpack.c.l.b16 %v270
        %v400 = vunpack.c.h.b16 %v270
        %v401 = vunpack.c.l.b16 %v271
        %v402 = vunpack.c.l.b16 %v272
        %v403 = vunpack.c.h.b16 %v272
        %v404 = vunpack.c.l.b16 %v273
        %v405 = vunpack.c.l.b16 %v274
        %v406 = vunpack.c.h.b16 %v274
        %v407 = vunpack.c.l.b16 %v275
        %v408 = vpack.c.b16 %v363, %v360
        %v409 = vpack.c.b16 %v364, %v361
        %v410 = vpack.c.b16 %v365, %v362
        %v411 = vpack.c.b16 %v369, %v366
        %v412 = vpack.c.b16 %v370, %v367
        %v413 = vpack.c.b16 %v371, %v368
        %v414 = vpack.c.b16 %v375, %v372
        %v415 = vpack.c.b16 %v376, %v373
        %v416 = vpack.c.b16 %v377, %v374
        %v417 = vpack.c.b16 %v381, %v378
        %v418 = vpack.c.b16 %v382, %v379
        %v419 = vpack.c.b16 %v383, %v380
        %v420 = vpack.c.b16 %v387, %v384
        %v421 = vpack.c.b16 %v388, %v385
        %v422 = vpack.c.b16 %v389, %v386
        %v423 = vpack.c.b16 %v393, %v390
        %v424 = vpack.c.b16 %v394, %v391
        %v425 = vpack.c.b16 %v395, %v392
        %v426 = vpack.c.b16 %v399, %v396
        %v427 = vpack.c.b16 %v400, %v397
        %v428 = vpack.c.b16 %v401, %v398
        %v429 = vpack.c.b16 %v405, %v402
        %v430 = vpack.c.b16 %v406, %v403
        %v431 = vpack.c.b16 %v407, %v404
        %v504 = vunpack.c.l.b16 %v280
        %v505 = vunpack.c.l.b16 %v281
        %v506 = vunpack.c.l.b16 %v282
        %v507 = vunpack.c.l.b16 %v283
        %v508 = vunpack.c.l.b16 %v284
        %v509 = vunpack.c.l.b16 %v285
        %v510 = vunpack.c.l.b16 %v286
        %v511 = vunpack.c.l.b16 %v287
        %v512 = vunpack.c.l.b16 %v288
        %v513 = vunpack.c.l.b16 %v289
        %v514 = vunpack.c.l.b16 %v290
        %v515 = vunpack.c.l.b16 %v291
        %v516 = vunpack.c.l.b16 %v292
        %v517 = vunpack.c.l.b16 %v293
        %v518 = vunpack.c.l.b16 %v294
        %v519 = vunpack.c.l.b16 %v295
        %v520 = vunpack.c.l.b16 %v296
        %v521 = vunpack.c.l.b16 %v297
        %v522 = vunpack.c.l.b16 %v298
        %v523 = vunpack.c.l.b16 %v299
        %v524 = vunpack.c.l.b16 %v300
        %v525 = vunpack.c.l.b16 %v301
        %v526 = vunpack.c.l.b16 %v302
        %v527 = vunpack.c.l.b16 %v303
        %v528 = vunpack.c.l.b16 %v304
        %v529 = vunpack.c.l.b16 %v305
        %v530 = vunpack.c.l.b16 %v306
        %v531 = vunpack.c.l.b16 %v307
        %v532 = vunpack.c.l.b16 %v308
        %v533 = vunpack.c.l.b16 %v309
        %v534 = vunpack.c.l.b16 %v310
        %v535 = vunpack.c.l.b16 %v311
        %v536 = vunpack.c.l.b16 %v312
        %v537 = vunpack.c.l.b16 %v313
        %v538 = vunpack.c.l.b16 %v314
        %v539 = vunpack.c.l.b16 %v315
        %v540 = vunpack.c.l.b16 %v316
        %v541 = vunpack.c.l.b16 %v317
        %v542 = vunpack.c.l.b16 %v318
        %v543 = vunpack.c.l.b16 %v319
        %v544 = vunpack.c.l.b16 %v320
        %v545 = vunpack.c.l.b16 %v321
        %v546 = vunpack.c.l.b16 %v322
        %v547 = vunpack.c.l.b16 %v323
        %v548 = vunpack.c.l.b16 %v324
        %v549 = vunpack.c.l.b16 %v325
        %v550 = vunpack.c.l.b16 %v326
        %v551 = vunpack.c.l.b16 %v327
        %v552 = vpack.c.b16 %v505, %v504
        %v553 = vpack.c.b16 %v507, %v506
        %v554 = vpack.c.b16 %v509, %v508
        %v555 = vpack.c.b16 %v511, %v510
        %v556 = vpack.c.b16 %v513, %v512
        %v557 = vpack.c.b16 %v515, %v514
        %v558 = vpack.c.b16 %v517, %v516
        %v559 = vpack.c.b16 %v519, %v518
        %v560 = vpack.c.b16 %v521, %v520
        %v561 = vpack.c.b16 %v523, %v522
        %v562 = vpack.c.b16 %v525, %v524
        %v563 = vpack.c.b16 %v527, %v526
        %v564 = vpack.c.b16 %v529, %v528
        %v565 = vpack.c.b16 %v531, %v530
        %v566 = vpack.c.b16 %v533, %v532
        %v567 = vpack.c.b16 %v535, %v534
        %v568 = vpack.c.b16 %v537, %v536
        %v569 = vpack.c.b16 %v539, %v538
        %v570 = vpack.c.b16 %v541, %v540
        %v571 = vpack.c.b16 %v543, %v542
        %v572 = vpack.c.b16 %v545, %v544
        %v573 = vpack.c.b16 %v547, %v546
        %v574 = vpack.c.b16 %v549, %v548
        %v575 = vpack.c.b16 %v551, %v550
        %600 = vmatpush.bf16.msra.mxu0 %v559
        %601 = vmatpush.bf16.msra.mxu0 %v558
        %602 = vmatpush.bf16.msra.mxu0 %v557
        %603 = vmatpush.bf16.msra.mxu0 %v556
        %604 = vmatpush.bf16.msra.mxu0 %v555
        %605 = vmatpush.bf16.msra.mxu0 %v554
        %606 = vmatpush.bf16.msra.mxu0 %v553
        %607 = vmatpush.bf16.msra.mxu0 %v552
        %608 = vmatmul.bf16.gmra.mxu0 %v408
        %v609 = vpop.f32.mrf.mxu0
        %v610 = vadd.f32 0.0, %v609
        %v611 = vpop.f32.mrf.mxu0
        %v612 = vadd.f32 0.0, %v611
        %613 = vmatmul.bf16.gmra.mxu0 %v411
        %v614 = vpop.f32.mrf.mxu0
        %v615 = vadd.f32 0.0, %v614
        %v616 = vpop.f32.mrf.mxu0
        %v617 = vadd.f32 0.0, %v616
        %618 = vmatmul.bf16.gmra.mxu0 %v414
        %v619 = vpop.f32.mrf.mxu0
        %v620 = vadd.f32 0.0, %v619
        %v621 = vpop.f32.mrf.mxu0
        %v622 = vadd.f32 0.0, %v621
        %623 = vmatmul.bf16.gmra.mxu0 %v417
        %v624 = vpop.f32.mrf.mxu0
        %v625 = vadd.f32 0.0, %v624
        %v626 = vpop.f32.mrf.mxu0
        %v627 = vadd.f32 0.0, %v626
        %628 = vmatmul.bf16.gmra.mxu0 %v420
        %v629 = vpop.f32.mrf.mxu0
        %v630 = vadd.f32 0.0, %v629
        %v631 = vpop.f32.mrf.mxu0
        %v632 = vadd.f32 0.0, %v631
        %633 = vmatmul.bf16.gmra.mxu0 %v423
        %v634 = vpop.f32.mrf.mxu0
        %v635 = vadd.f32 0.0, %v634
        %v636 = vpop.f32.mrf.mxu0
        %v637 = vadd.f32 0.0, %v636
        %638 = vmatmul.bf16.gmra.mxu0 %v426
        %v639 = vpop.f32.mrf.mxu0
        %v640 = vadd.f32 0.0, %v639
        %v641 = vpop.f32.mrf.mxu0
        %v642 = vadd.f32 0.0, %v641
        %643 = vmatmul.bf16.gmra.mxu0 %v429
        %v644 = vpop.f32.mrf.mxu0
        %v645 = vadd.f32 0.0, %v644
        %v646 = vpop.f32.mrf.mxu0
        %v647 = vadd.f32 0.0, %v646
        %648 = vdwg.mxu0
        %649 = vmatpush.bf16.msra.mxu0 %v567
        %650 = vmatpush.bf16.msra.mxu0 %v566
        %651 = vmatpush.bf16.msra.mxu0 %v565
        %652 = vmatpush.bf16.msra.mxu0 %v564
        %653 = vmatpush.bf16.msra.mxu0 %v563
        %654 = vmatpush.bf16.msra.mxu0 %v562
        %655 = vmatpush.bf16.msra.mxu0 %v561
        %656 = vmatpush.bf16.msra.mxu0 %v560
        %657 = vmatmul.bf16.gmra.mxu0 %v409
        %v658 = vpop.f32.mrf.mxu0
        %v659 = vadd.f32 %v610, %v658
        %v660 = vpop.f32.mrf.mxu0
        %v661 = vadd.f32 %v612, %v660
        %662 = vmatmul.bf16.gmra.mxu0 %v412
        %v663 = vpop.f32.mrf.mxu0
        %v664 = vadd.f32 %v615, %v663
        %v665 = vpop.f32.mrf.mxu0
        %v666 = vadd.f32 %v617, %v665
        %667 = vmatmul.bf16.gmra.mxu0 %v415
        %v668 = vpop.f32.mrf.mxu0
        %v669 = vadd.f32 %v620, %v668
        %v670 = vpop.f32.mrf.mxu0
        %v671 = vadd.f32 %v622, %v670
        %672 = vmatmul.bf16.gmra.mxu0 %v418
        %v673 = vpop.f32.mrf.mxu0
        %v674 = vadd.f32 %v625, %v673
        %v675 = vpop.f32.mrf.mxu0
        %v676 = vadd.f32 %v627, %v675
        %677 = vmatmul.bf16.gmra.mxu0 %v421
        %v678 = vpop.f32.mrf.mxu0
        %v679 = vadd.f32 %v630, %v678
        %v680 = vpop.f32.mrf.mxu0
        %v681 = vadd.f32 %v632, %v680
        %682 = vmatmul.bf16.gmra.mxu0 %v424
        %v683 = vpop.f32.mrf.mxu0
        %v684 = vadd.f32 %v635, %v683
        %v685 = vpop.f32.mrf.mxu0
        %v686 = vadd.f32 %v637, %v685
        %687 = vmatmul.bf16.gmra.mxu0 %v427
        %v688 = vpop.f32.mrf.mxu0
        %v689 = vadd.f32 %v640, %v688
        %v690 = vpop.f32.mrf.mxu0
        %v691 = vadd.f32 %v642, %v690
        %692 = vmatmul.bf16.gmra.mxu0 %v430
        %v693 = vpop.f32.mrf.mxu0
        %v694 = vadd.f32 %v645, %v693
        %v695 = vpop.f32.mrf.mxu0
        %v696 = vadd.f32 %v647, %v695
        %697 = vdwg.mxu0
        %698 = vmatpush.bf16.msra.mxu0 %v575
        %699 = vmatpush.bf16.msra.mxu0 %v574
        %700 = vmatpush.bf16.msra.mxu0 %v573
        %701 = vmatpush.bf16.msra.mxu0 %v572
        %702 = vmatpush.bf16.msra.mxu0 %v571
        %703 = vmatpush.bf16.msra.mxu0 %v570
        %704 = vmatpush.bf16.msra.mxu0 %v569
        %705 = vmatpush.bf16.msra.mxu0 %v568
        %706 = vmatmul.bf16.gmra.mxu0 %v410
        %v707 = vpop.f32.mrf.mxu0
        %v708 = vadd.f32 %v659, %v707
        %v709 = vpop.f32.mrf.mxu0
        %v710 = vadd.f32 %v661, %v709
        %711 = vmatmul.bf16.gmra.mxu0 %v413
        %v712 = vpop.f32.mrf.mxu0
        %v713 = vadd.f32 %v664, %v712
        %v714 = vpop.f32.mrf.mxu0
        %v715 = vadd.f32 %v666, %v714
        %716 = vmatmul.bf16.gmra.mxu0 %v416
        %v717 = vpop.f32.mrf.mxu0
        %v718 = vadd.f32 %v669, %v717
        %v719 = vpop.f32.mrf.mxu0
        %v720 = vadd.f32 %v671, %v719
        %721 = vmatmul.bf16.gmra.mxu0 %v419
        %v722 = vpop.f32.mrf.mxu0
        %v723 = vadd.f32 %v674, %v722
        %v724 = vpop.f32.mrf.mxu0
        %v725 = vadd.f32 %v676, %v724
        %726 = vmatmul.bf16.gmra.mxu0 %v422
        %v727 = vpop.f32.mrf.mxu0
        %v728 = vadd.f32 %v679, %v727
        %v729 = vpop.f32.mrf.mxu0
        %v730 = vadd.f32 %v681, %v729
        %731 = vmatmul.bf16.gmra.mxu0 %v425
        %v732 = vpop.f32.mrf.mxu0
        %v733 = vadd.f32 %v684, %v732
        %v734 = vpop.f32.mrf.mxu0
        %v735 = vadd.f32 %v686, %v734
        %736 = vmatmul.bf16.gmra.mxu0 %v428
        %v737 = vpop.f32.mrf.mxu0
        %v738 = vadd.f32 %v689, %v737
        %v739 = vpop.f32.mrf.mxu0
        %v740 = vadd.f32 %v691, %v739
        %741 = vmatmul.bf16.gmra.mxu0 %v431
        %v742 = vpop.f32.mrf.mxu0
        %v743 = vadd.f32 %v694, %v742
        %v744 = vpop.f32.mrf.mxu0
        %v745 = vadd.f32 %v696, %v744
        %746 = vdwg.mxu0
        %v747 = vadd.f32 %v228, %v708
        %v748 = vadd.f32 %v229, %v710
        %v749 = vadd.f32 %v230, %v713
        %v750 = vadd.f32 %v231, %v715
        %v751 = vadd.f32 %v232, %v718
        %v752 = vadd.f32 %v233, %v720
        %v753 = vadd.f32 %v234, %v723
        %v754 = vadd.f32 %v235, %v725
        %v755 = vadd.f32 %v236, %v728
        %v756 = vadd.f32 %v237, %v730
        %v757 = vadd.f32 %v238, %v733
        %v758 = vadd.f32 %v239, %v735
        %v759 = vadd.f32 %v240, %v738
        %v760 = vadd.f32 %v241, %v740
        %v761 = vadd.f32 %v242, %v743
        %v762 = vadd.f32 %v243, %v745
        %v763 = vld [vmem:[%s185 + $0xc] sm:$0xff]
        %v764 = vld [vmem:[%s185 + $0x14] sm:$0xf]
        %v765 = vld [vmem:[%s185 + $0x48] sm:$0xff]
        %v766 = vld [vmem:[%s185 + $0x50] sm:$0xf]
        %v767 = vld [vmem:[%s185 + $0x84] sm:$0xff]
        %v768 = vld [vmem:[%s185 + $0x8c] sm:$0xf]
        %v769 = vld [vmem:[%s185 + $0xc0] sm:$0xff]
        %v770 = vld [vmem:[%s185 + $0xc8] sm:$0xf]
        %v771 = vld [vmem:[%s185 + $0xfc] sm:$0xff]
        %v772 = vld [vmem:[%s185 + $0x104] sm:$0xf]
        %v773 = vld [vmem:[%s185 + $0x138] sm:$0xff]
        %v774 = vld [vmem:[%s185 + $0x140] sm:$0xf]
        %v775 = vld [vmem:[%s185 + $0x174] sm:$0xff]
        %v776 = vld [vmem:[%s185 + $0x17c] sm:$0xf]
        %v777 = vld [vmem:[%s185 + $0x1b0] sm:$0xff]
        %v778 = vld [vmem:[%s185 + $0x1b8] sm:$0xf]
        %v779 = vld [vmem:[%s185 + $0x1ec] sm:$0xff]
        %v780 = vld [vmem:[%s185 + $0x1f4] sm:$0xf]
        %v781 = vld [vmem:[%s185 + $0x228] sm:$0xff]
        %v782 = vld [vmem:[%s185 + $0x230] sm:$0xf]
        %v783 = vld [vmem:[%s185 + $0x264] sm:$0xff]
        %v784 = vld [vmem:[%s185 + $0x26c] sm:$0xf]
        %v785 = vld [vmem:[%s185 + $0x2a0] sm:$0xff]
        %v786 = vld [vmem:[%s185 + $0x2a8] sm:$0xf]
        %v787 = vld [vmem:[%s185 + $0x2dc] sm:$0xff]
        %v788 = vld [vmem:[%s185 + $0x2e4] sm:$0xf]
        %v789 = vld [vmem:[%s185 + $0x318] sm:$0xff]
        %v790 = vld [vmem:[%s185 + $0x320] sm:$0xf]
        %v791 = vld [vmem:[%s185 + $0x354] sm:$0xff]
        %v792 = vld [vmem:[%s185 + $0x35c] sm:$0xf]
        %v793 = vld [vmem:[%s185 + $0x390] sm:$0xff]
        %v794 = vld [vmem:[%s185 + $0x398] sm:$0xf]
        %s795 = sadd.s32 %s276, 64
        %s796 = smul.addr %s795, 4
        %s797 = scalar_lea.vmem %s2, %s796
        %v798 = vld [vmem:[%s797] sm:$0xf]
        %v799 = vld [vmem:[%s797 + $0x4] sm:$0xf]
        %v800 = vld [vmem:[%s797 + $0x8] sm:$0xf]
        %v801 = vld [vmem:[%s797 + $0xc] sm:$0xf]
        %v802 = vld [vmem:[%s797 + $0x10] sm:$0xf]
        %v803 = vld [vmem:[%s797 + $0x14] sm:$0xf]
        %v804 = vld [vmem:[%s797 + $0x18] sm:$0xf]
        %v805 = vld [vmem:[%s797 + $0x1c] sm:$0xf]
        %v806 = vld [vmem:[%s797 + $0x20] sm:$0xf]
        %v807 = vld [vmem:[%s797 + $0x24] sm:$0xf]
        %v808 = vld [vmem:[%s797 + $0x28] sm:$0xf]
        %v809 = vld [vmem:[%s797 + $0x2c] sm:$0xf]
        %v810 = vld [vmem:[%s797 + $0x30] sm:$0xf]
        %v811 = vld [vmem:[%s797 + $0x34] sm:$0xf]
        %v812 = vld [vmem:[%s797 + $0x38] sm:$0xf]
        %v813 = vld [vmem:[%s797 + $0x3c] sm:$0xf]
        %v814 = vld [vmem:[%s797 + $0x40] sm:$0xf]
        %v815 = vld [vmem:[%s797 + $0x44] sm:$0xf]
        %v816 = vld [vmem:[%s797 + $0x48] sm:$0xf]
        %v817 = vld [vmem:[%s797 + $0x4c] sm:$0xf]
        %v818 = vld [vmem:[%s797 + $0x50] sm:$0xf]
        %v819 = vld [vmem:[%s797 + $0x54] sm:$0xf]
        %v820 = vld [vmem:[%s797 + $0x58] sm:$0xf]
        %v821 = vld [vmem:[%s797 + $0x5c] sm:$0xf]
        %v822 = vld [vmem:[%s797 + $0x60] sm:$0xf]
        %v823 = vld [vmem:[%s797 + $0x64] sm:$0xf]
        %v824 = vld [vmem:[%s797 + $0x68] sm:$0xf]
        %v825 = vld [vmem:[%s797 + $0x6c] sm:$0xf]
        %v826 = vld [vmem:[%s797 + $0x70] sm:$0xf]
        %v827 = vld [vmem:[%s797 + $0x74] sm:$0xf]
        %v828 = vld [vmem:[%s797 + $0x78] sm:$0xf]
        %v829 = vld [vmem:[%s797 + $0x7c] sm:$0xf]
        %v830 = vld [vmem:[%s797 + $0x80] sm:$0xf]
        %v831 = vld [vmem:[%s797 + $0x84] sm:$0xf]
        %v832 = vld [vmem:[%s797 + $0x88] sm:$0xf]
        %v833 = vld [vmem:[%s797 + $0x8c] sm:$0xf]
        %v834 = vld [vmem:[%s797 + $0x90] sm:$0xf]
        %v835 = vld [vmem:[%s797 + $0x94] sm:$0xf]
        %v836 = vld [vmem:[%s797 + $0x98] sm:$0xf]
        %v837 = vld [vmem:[%s797 + $0x9c] sm:$0xf]
        %v838 = vld [vmem:[%s797 + $0xa0] sm:$0xf]
        %v839 = vld [vmem:[%s797 + $0xa4] sm:$0xf]
        %v840 = vld [vmem:[%s797 + $0xa8] sm:$0xf]
        %v841 = vld [vmem:[%s797 + $0xac] sm:$0xf]
        %v842 = vld [vmem:[%s797 + $0xb0] sm:$0xf]
        %v843 = vld [vmem:[%s797 + $0xb4] sm:$0xf]
        %v844 = vld [vmem:[%s797 + $0xb8] sm:$0xf]
        %v845 = vld [vmem:[%s797 + $0xbc] sm:$0xf]
        %v878 = vunpack.c.l.b16 %v763
        %v879 = vunpack.c.h.b16 %v763
        %v880 = vunpack.c.l.b16 %v764
        %v881 = vunpack.c.l.b16 %v765
        %v882 = vunpack.c.h.b16 %v765
        %v883 = vunpack.c.l.b16 %v766
        %v884 = vunpack.c.l.b16 %v767
        %v885 = vunpack.c.h.b16 %v767
        %v886 = vunpack.c.l.b16 %v768
        %v887 = vunpack.c.l.b16 %v769
        %v888 = vunpack.c.h.b16 %v769
        %v889 = vunpack.c.l.b16 %v770
        %v890 = vunpack.c.l.b16 %v771
        %v891 = vunpack.c.h.b16 %v771
        %v892 = vunpack.c.l.b16 %v772
        %v893 = vunpack.c.l.b16 %v773
        %v894 = vunpack.c.h.b16 %v773
        %v895 = vunpack.c.l.b16 %v774
        %v896 = vunpack.c.l.b16 %v775
        %v897 = vunpack.c.h.b16 %v775
        %v898 = vunpack.c.l.b16 %v776
        %v899 = vunpack.c.l.b16 %v777
        %v900 = vunpack.c.h.b16 %v777
        %v901 = vunpack.c.l.b16 %v778
        %v902 = vunpack.c.l.b16 %v779
        %v903 = vunpack.c.h.b16 %v779
        %v904 = vunpack.c.l.b16 %v780
        %v905 = vunpack.c.l.b16 %v781
        %v906 = vunpack.c.h.b16 %v781
        %v907 = vunpack.c.l.b16 %v782
        %v908 = vunpack.c.l.b16 %v783
        %v909 = vunpack.c.h.b16 %v783
        %v910 = vunpack.c.l.b16 %v784
        %v911 = vunpack.c.l.b16 %v785
        %v912 = vunpack.c.h.b16 %v785
        %v913 = vunpack.c.l.b16 %v786
        %v914 = vunpack.c.l.b16 %v787
        %v915 = vunpack.c.h.b16 %v787
        %v916 = vunpack.c.l.b16 %v788
        %v917 = vunpack.c.l.b16 %v789
        %v918 = vunpack.c.h.b16 %v789
        %v919 = vunpack.c.l.b16 %v790
        %v920 = vunpack.c.l.b16 %v791
        %v921 = vunpack.c.h.b16 %v791
        %v922 = vunpack.c.l.b16 %v792
        %v923 = vunpack.c.l.b16 %v793
        %v924 = vunpack.c.h.b16 %v793
        %v925 = vunpack.c.l.b16 %v794
        %v926 = vpack.c.b16 %v881, %v878
        %v927 = vpack.c.b16 %v882, %v879
        %v928 = vpack.c.b16 %v883, %v880
        %v929 = vpack.c.b16 %v887, %v884
        %v930 = vpack.c.b16 %v888, %v885
        %v931 = vpack.c.b16 %v889, %v886
        %v932 = vpack.c.b16 %v893, %v890
        %v933 = vpack.c.b16 %v894, %v891
        %v934 = vpack.c.b16 %v895, %v892
        %v935 = vpack.c.b16 %v899, %v896
        %v936 = vpack.c.b16 %v900, %v897
        %v937 = vpack.c.b16 %v901, %v898
        %v938 = vpack.c.b16 %v905, %v902
        %v939 = vpack.c.b16 %v906, %v903
        %v940 = vpack.c.b16 %v907, %v904
        %v941 = vpack.c.b16 %v911, %v908
        %v942 = vpack.c.b16 %v912, %v909
        %v943 = vpack.c.b16 %v913, %v910
        %v944 = vpack.c.b16 %v917, %v914
        %v945 = vpack.c.b16 %v918, %v915
        %v946 = vpack.c.b16 %v919, %v916
        %v947 = vpack.c.b16 %v923, %v920
        %v948 = vpack.c.b16 %v924, %v921
        %v949 = vpack.c.b16 %v925, %v922
        %v1022 = vunpack.c.l.b16 %v798
        %v1023 = vunpack.c.l.b16 %v799
        %v1024 = vunpack.c.l.b16 %v800
        %v1025 = vunpack.c.l.b16 %v801
        %v1026 = vunpack.c.l.b16 %v802
        %v1027 = vunpack.c.l.b16 %v803
        %v1028 = vunpack.c.l.b16 %v804
        %v1029 = vunpack.c.l.b16 %v805
        %v1030 = vunpack.c.l.b16 %v806
        %v1031 = vunpack.c.l.b16 %v807
        %v1032 = vunpack.c.l.b16 %v808
        %v1033 = vunpack.c.l.b16 %v809
        %v1034 = vunpack.c.l.b16 %v810
        %v1035 = vunpack.c.l.b16 %v811
        %v1036 = vunpack.c.l.b16 %v812
        %v1037 = vunpack.c.l.b16 %v813
        %v1038 = vunpack.c.l.b16 %v814
        %v1039 = vunpack.c.l.b16 %v815
        %v1040 = vunpack.c.l.b16 %v816
        %v1041 = vunpack.c.l.b16 %v817
        %v1042 = vunpack.c.l.b16 %v818
        %v1043 = vunpack.c.l.b16 %v819
        %v1044 = vunpack.c.l.b16 %v820
        %v1045 = vunpack.c.l.b16 %v821
        %v1046 = vunpack.c.l.b16 %v822
        %v1047 = vunpack.c.l.b16 %v823
        %v1048 = vunpack.c.l.b16 %v824
        %v1049 = vunpack.c.l.b16 %v825
        %v1050 = vunpack.c.l.b16 %v826
        %v1051 = vunpack.c.l.b16 %v827
        %v1052 = vunpack.c.l.b16 %v828
        %v1053 = vunpack.c.l.b16 %v829
        %v1054 = vunpack.c.l.b16 %v830
        %v1055 = vunpack.c.l.b16 %v831
        %v1056 = vunpack.c.l.b16 %v832
        %v1057 = vunpack.c.l.b16 %v833
        %v1058 = vunpack.c.l.b16 %v834
        %v1059 = vunpack.c.l.b16 %v835
        %v1060 = vunpack.c.l.b16 %v836
        %v1061 = vunpack.c.l.b16 %v837
        %v1062 = vunpack.c.l.b16 %v838
        %v1063 = vunpack.c.l.b16 %v839
        %v1064 = vunpack.c.l.b16 %v840
        %v1065 = vunpack.c.l.b16 %v841
        %v1066 = vunpack.c.l.b16 %v842
        %v1067 = vunpack.c.l.b16 %v843
        %v1068 = vunpack.c.l.b16 %v844
        %v1069 = vunpack.c.l.b16 %v845
        %v1070 = vpack.c.b16 %v1023, %v1022
        %v1071 = vpack.c.b16 %v1025, %v1024
        %v1072 = vpack.c.b16 %v1027, %v1026
        %v1073 = vpack.c.b16 %v1029, %v1028
        %v1074 = vpack.c.b16 %v1031, %v1030
        %v1075 = vpack.c.b16 %v1033, %v1032
        %v1076 = vpack.c.b16 %v1035, %v1034
        %v1077 = vpack.c.b16 %v1037, %v1036
        %v1078 = vpack.c.b16 %v1039, %v1038
        %v1079 = vpack.c.b16 %v1041, %v1040
        %v1080 = vpack.c.b16 %v1043, %v1042
        %v1081 = vpack.c.b16 %v1045, %v1044
        %v1082 = vpack.c.b16 %v1047, %v1046
        %v1083 = vpack.c.b16 %v1049, %v1048
        %v1084 = vpack.c.b16 %v1051, %v1050
        %v1085 = vpack.c.b16 %v1053, %v1052
        %v1086 = vpack.c.b16 %v1055, %v1054
        %v1087 = vpack.c.b16 %v1057, %v1056
        %v1088 = vpack.c.b16 %v1059, %v1058
        %v1089 = vpack.c.b16 %v1061, %v1060
        %v1090 = vpack.c.b16 %v1063, %v1062
        %v1091 = vpack.c.b16 %v1065, %v1064
        %v1092 = vpack.c.b16 %v1067, %v1066
        %v1093 = vpack.c.b16 %v1069, %v1068
        %1118 = vmatpush.bf16.msra.mxu0 %v1077
        %1119 = vmatpush.bf16.msra.mxu0 %v1076
        %1120 = vmatpush.bf16.msra.mxu0 %v1075
        %1121 = vmatpush.bf16.msra.mxu0 %v1074
        %1122 = vmatpush.bf16.msra.mxu0 %v1073
        %1123 = vmatpush.bf16.msra.mxu0 %v1072
        %1124 = vmatpush.bf16.msra.mxu0 %v1071
        %1125 = vmatpush.bf16.msra.mxu0 %v1070
        %1126 = vmatmul.bf16.gmra.mxu0 %v926
        %v1127 = vpop.f32.mrf.mxu0
        %v1128 = vadd.f32 0.0, %v1127
        %v1129 = vpop.f32.mrf.mxu0
        %v1130 = vadd.f32 0.0, %v1129
        %1131 = vmatmul.bf16.gmra.mxu0 %v929
        %v1132 = vpop.f32.mrf.mxu0
        %v1133 = vadd.f32 0.0, %v1132
        %v1134 = vpop.f32.mrf.mxu0
        %v1135 = vadd.f32 0.0, %v1134
        %1136 = vmatmul.bf16.gmra.mxu0 %v932
        %v1137 = vpop.f32.mrf.mxu0
        %v1138 = vadd.f32 0.0, %v1137
        %v1139 = vpop.f32.mrf.mxu0
        %v1140 = vadd.f32 0.0, %v1139
        %1141 = vmatmul.bf16.gmra.mxu0 %v935
        %v1142 = vpop.f32.mrf.mxu0
        %v1143 = vadd.f32 0.0, %v1142
        %v1144 = vpop.f32.mrf.mxu0
        %v1145 = vadd.f32 0.0, %v1144
        %1146 = vmatmul.bf16.gmra.mxu0 %v938
        %v1147 = vpop.f32.mrf.mxu0
        %v1148 = vadd.f32 0.0, %v1147
        %v1149 = vpop.f32.mrf.mxu0
        %v1150 = vadd.f32 0.0, %v1149
        %1151 = vmatmul.bf16.gmra.mxu0 %v941
        %v1152 = vpop.f32.mrf.mxu0
        %v1153 = vadd.f32 0.0, %v1152
        %v1154 = vpop.f32.mrf.mxu0
        %v1155 = vadd.f32 0.0, %v1154
        %1156 = vmatmul.bf16.gmra.mxu0 %v944
        %v1157 = vpop.f32.mrf.mxu0
        %v1158 = vadd.f32 0.0, %v1157
        %v1159 = vpop.f32.mrf.mxu0
        %v1160 = vadd.f32 0.0, %v1159
        %1161 = vmatmul.bf16.gmra.mxu0 %v947
        %v1162 = vpop.f32.mrf.mxu0
        %v1163 = vadd.f32 0.0, %v1162
        %v1164 = vpop.f32.mrf.mxu0
        %v1165 = vadd.f32 0.0, %v1164
        %1166 = vdwg.mxu0
        %1167 = vmatpush.bf16.msra.mxu0 %v1085
        %1168 = vmatpush.bf16.msra.mxu0 %v1084
        %1169 = vmatpush.bf16.msra.mxu0 %v1083
        %1170 = vmatpush.bf16.msra.mxu0 %v1082
        %1171 = vmatpush.bf16.msra.mxu0 %v1081
        %1172 = vmatpush.bf16.msra.mxu0 %v1080
        %1173 = vmatpush.bf16.msra.mxu0 %v1079
        %1174 = vmatpush.bf16.msra.mxu0 %v1078
        %1175 = vmatmul.bf16.gmra.mxu0 %v927
        %v1176 = vpop.f32.mrf.mxu0
        %v1177 = vadd.f32 %v1128, %v1176
        %v1178 = vpop.f32.mrf.mxu0
        %v1179 = vadd.f32 %v1130, %v1178
        %1180 = vmatmul.bf16.gmra.mxu0 %v930
        %v1181 = vpop.f32.mrf.mxu0
        %v1182 = vadd.f32 %v1133, %v1181
        %v1183 = vpop.f32.mrf.mxu0
        %v1184 = vadd.f32 %v1135, %v1183
        %1185 = vmatmul.bf16.gmra.mxu0 %v933
        %v1186 = vpop.f32.mrf.mxu0
        %v1187 = vadd.f32 %v1138, %v1186
        %v1188 = vpop.f32.mrf.mxu0
        %v1189 = vadd.f32 %v1140, %v1188
        %1190 = vmatmul.bf16.gmra.mxu0 %v936
        %v1191 = vpop.f32.mrf.mxu0
        %v1192 = vadd.f32 %v1143, %v1191
        %v1193 = vpop.f32.mrf.mxu0
        %v1194 = vadd.f32 %v1145, %v1193
        %1195 = vmatmul.bf16.gmra.mxu0 %v939
        %v1196 = vpop.f32.mrf.mxu0
        %v1197 = vadd.f32 %v1148, %v1196
        %v1198 = vpop.f32.mrf.mxu0
        %v1199 = vadd.f32 %v1150, %v1198
        %1200 = vmatmul.bf16.gmra.mxu0 %v942
        %v1201 = vpop.f32.mrf.mxu0
        %v1202 = vadd.f32 %v1153, %v1201
        %v1203 = vpop.f32.mrf.mxu0
        %v1204 = vadd.f32 %v1155, %v1203
        %1205 = vmatmul.bf16.gmra.mxu0 %v945
        %v1206 = vpop.f32.mrf.mxu0
        %v1207 = vadd.f32 %v1158, %v1206
        %v1208 = vpop.f32.mrf.mxu0
        %v1209 = vadd.f32 %v1160, %v1208
        %1210 = vmatmul.bf16.gmra.mxu0 %v948
        %v1211 = vpop.f32.mrf.mxu0
        %v1212 = vadd.f32 %v1163, %v1211
        %v1213 = vpop.f32.mrf.mxu0
        %v1214 = vadd.f32 %v1165, %v1213
        %1215 = vdwg.mxu0
        %1216 = vmatpush.bf16.msra.mxu0 %v1093
        %1217 = vmatpush.bf16.msra.mxu0 %v1092
        %1218 = vmatpush.bf16.msra.mxu0 %v1091
        %1219 = vmatpush.bf16.msra.mxu0 %v1090
        %1220 = vmatpush.bf16.msra.mxu0 %v1089
        %1221 = vmatpush.bf16.msra.mxu0 %v1088
        %1222 = vmatpush.bf16.msra.mxu0 %v1087
        %1223 = vmatpush.bf16.msra.mxu0 %v1086
        %1224 = vmatmul.bf16.gmra.mxu0 %v928
        %v1225 = vpop.f32.mrf.mxu0
        %v1226 = vadd.f32 %v1177, %v1225
        %v1227 = vpop.f32.mrf.mxu0
        %v1228 = vadd.f32 %v1179, %v1227
        %1229 = vmatmul.bf16.gmra.mxu0 %v931
        %v1230 = vpop.f32.mrf.mxu0
        %v1231 = vadd.f32 %v1182, %v1230
        %v1232 = vpop.f32.mrf.mxu0
        %v1233 = vadd.f32 %v1184, %v1232
        %1234 = vmatmul.bf16.gmra.mxu0 %v934
        %v1235 = vpop.f32.mrf.mxu0
        %v1236 = vadd.f32 %v1187, %v1235
        %v1237 = vpop.f32.mrf.mxu0
        %v1238 = vadd.f32 %v1189, %v1237
        %1239 = vmatmul.bf16.gmra.mxu0 %v937
        %v1240 = vpop.f32.mrf.mxu0
        %v1241 = vadd.f32 %v1192, %v1240
        %v1242 = vpop.f32.mrf.mxu0
        %v1243 = vadd.f32 %v1194, %v1242
        %1244 = vmatmul.bf16.gmra.mxu0 %v940
        %v1245 = vpop.f32.mrf.mxu0
        %v1246 = vadd.f32 %v1197, %v1245
        %v1247 = vpop.f32.mrf.mxu0
        %v1248 = vadd.f32 %v1199, %v1247
        %1249 = vmatmul.bf16.gmra.mxu0 %v943
        %v1250 = vpop.f32.mrf.mxu0
        %v1251 = vadd.f32 %v1202, %v1250
        %v1252 = vpop.f32.mrf.mxu0
        %v1253 = vadd.f32 %v1204, %v1252
        %1254 = vmatmul.bf16.gmra.mxu0 %v946
        %v1255 = vpop.f32.mrf.mxu0
        %v1256 = vadd.f32 %v1207, %v1255
        %v1257 = vpop.f32.mrf.mxu0
        %v1258 = vadd.f32 %v1209, %v1257
        %1259 = vmatmul.bf16.gmra.mxu0 %v949
        %v1260 = vpop.f32.mrf.mxu0
        %v1261 = vadd.f32 %v1212, %v1260
        %v1262 = vpop.f32.mrf.mxu0
        %v1263 = vadd.f32 %v1214, %v1262
        %1264 = vdwg.mxu0
        %v1265 = vadd.f32 %v747, %v1226
        %v1266 = vadd.f32 %v748, %v1228
        %v1267 = vadd.f32 %v749, %v1231
        %v1268 = vadd.f32 %v750, %v1233
        %v1269 = vadd.f32 %v751, %v1236
        %v1270 = vadd.f32 %v752, %v1238
        %v1271 = vadd.f32 %v753, %v1241
        %v1272 = vadd.f32 %v754, %v1243
        %v1273 = vadd.f32 %v755, %v1246
        %v1274 = vadd.f32 %v756, %v1248
        %v1275 = vadd.f32 %v757, %v1251
        %v1276 = vadd.f32 %v758, %v1253
        %v1277 = vadd.f32 %v759, %v1256
        %v1278 = vadd.f32 %v760, %v1258
        %v1279 = vadd.f32 %v761, %v1261
        %v1280 = vadd.f32 %v762, %v1263
        %v1281 = vld [vmem:[%s185 + $0x18] sm:$0xff]
        %v1282 = vld [vmem:[%s185 + $0x20] sm:$0xf]
        %v1283 = vld [vmem:[%s185 + $0x54] sm:$0xff]
        %v1284 = vld [vmem:[%s185 + $0x5c] sm:$0xf]
        %v1285 = vld [vmem:[%s185 + $0x90] sm:$0xff]
        %v1286 = vld [vmem:[%s185 + $0x98] sm:$0xf]
        %v1287 = vld [vmem:[%s185 + $0xcc] sm:$0xff]
        %v1288 = vld [vmem:[%s185 + $0xd4] sm:$0xf]
        %v1289 = vld [vmem:[%s185 + $0x108] sm:$0xff]
        %v1290 = vld [vmem:[%s185 + $0x110] sm:$0xf]
        %v1291 = vld [vmem:[%s185 + $0x144] sm:$0xff]
        %v1292 = vld [vmem:[%s185 + $0x14c] sm:$0xf]
        %v1293 = vld [vmem:[%s185 + $0x180] sm:$0xff]
        %v1294 = vld [vmem:[%s185 + $0x188] sm:$0xf]
        %v1295 = vld [vmem:[%s185 + $0x1bc] sm:$0xff]
        %v1296 = vld [vmem:[%s185 + $0x1c4] sm:$0xf]
        %v1297 = vld [vmem:[%s185 + $0x1f8] sm:$0xff]
        %v1298 = vld [vmem:[%s185 + $0x200] sm:$0xf]
        %v1299 = vld [vmem:[%s185 + $0x234] sm:$0xff]
        %v1300 = vld [vmem:[%s185 + $0x23c] sm:$0xf]
        %v1301 = vld [vmem:[%s185 + $0x270] sm:$0xff]
        %v1302 = vld [vmem:[%s185 + $0x278] sm:$0xf]
        %v1303 = vld [vmem:[%s185 + $0x2ac] sm:$0xff]
        %v1304 = vld [vmem:[%s185 + $0x2b4] sm:$0xf]
        %v1305 = vld [vmem:[%s185 + $0x2e8] sm:$0xff]
        %v1306 = vld [vmem:[%s185 + $0x2f0] sm:$0xf]
        %v1307 = vld [vmem:[%s185 + $0x324] sm:$0xff]
        %v1308 = vld [vmem:[%s185 + $0x32c] sm:$0xf]
        %v1309 = vld [vmem:[%s185 + $0x360] sm:$0xff]
        %v1310 = vld [vmem:[%s185 + $0x368] sm:$0xf]
        %v1311 = vld [vmem:[%s185 + $0x39c] sm:$0xff]
        %v1312 = vld [vmem:[%s185 + $0x3a4] sm:$0xf]
        %s1313 = sadd.s32 %s276, 128
        %s1314 = smul.addr %s1313, 4
        %s1315 = scalar_lea.vmem %s2, %s1314
        %v1316 = vld [vmem:[%s1315] sm:$0xf]
        %v1317 = vld [vmem:[%s1315 + $0x4] sm:$0xf]
        %v1318 = vld [vmem:[%s1315 + $0x8] sm:$0xf]
        %v1319 = vld [vmem:[%s1315 + $0xc] sm:$0xf]
        %v1320 = vld [vmem:[%s1315 + $0x10] sm:$0xf]
        %v1321 = vld [vmem:[%s1315 + $0x14] sm:$0xf]
        %v1322 = vld [vmem:[%s1315 + $0x18] sm:$0xf]
        %v1323 = vld [vmem:[%s1315 + $0x1c] sm:$0xf]
        %v1324 = vld [vmem:[%s1315 + $0x20] sm:$0xf]
        %v1325 = vld [vmem:[%s1315 + $0x24] sm:$0xf]
        %v1326 = vld [vmem:[%s1315 + $0x28] sm:$0xf]
        %v1327 = vld [vmem:[%s1315 + $0x2c] sm:$0xf]
        %v1328 = vld [vmem:[%s1315 + $0x30] sm:$0xf]
        %v1329 = vld [vmem:[%s1315 + $0x34] sm:$0xf]
        %v1330 = vld [vmem:[%s1315 + $0x38] sm:$0xf]
        %v1331 = vld [vmem:[%s1315 + $0x3c] sm:$0xf]
        %v1332 = vld [vmem:[%s1315 + $0x40] sm:$0xf]
        %v1333 = vld [vmem:[%s1315 + $0x44] sm:$0xf]
        %v1334 = vld [vmem:[%s1315 + $0x48] sm:$0xf]
        %v1335 = vld [vmem:[%s1315 + $0x4c] sm:$0xf]
        %v1336 = vld [vmem:[%s1315 + $0x50] sm:$0xf]
        %v1337 = vld [vmem:[%s1315 + $0x54] sm:$0xf]
        %v1338 = vld [vmem:[%s1315 + $0x58] sm:$0xf]
        %v1339 = vld [vmem:[%s1315 + $0x5c] sm:$0xf]
        %v1340 = vld [vmem:[%s1315 + $0x60] sm:$0xf]
        %v1341 = vld [vmem:[%s1315 + $0x64] sm:$0xf]
        %v1342 = vld [vmem:[%s1315 + $0x68] sm:$0xf]
        %v1343 = vld [vmem:[%s1315 + $0x6c] sm:$0xf]
        %v1344 = vld [vmem:[%s1315 + $0x70] sm:$0xf]
        %v1345 = vld [vmem:[%s1315 + $0x74] sm:$0xf]
        %v1346 = vld [vmem:[%s1315 + $0x78] sm:$0xf]
        %v1347 = vld [vmem:[%s1315 + $0x7c] sm:$0xf]
        %v1348 = vld [vmem:[%s1315 + $0x80] sm:$0xf]
        %v1349 = vld [vmem:[%s1315 + $0x84] sm:$0xf]
        %v1350 = vld [vmem:[%s1315 + $0x88] sm:$0xf]
        %v1351 = vld [vmem:[%s1315 + $0x8c] sm:$0xf]
        %v1352 = vld [vmem:[%s1315 + $0x90] sm:$0xf]
        %v1353 = vld [vmem:[%s1315 + $0x94] sm:$0xf]
        %v1354 = vld [vmem:[%s1315 + $0x98] sm:$0xf]
        %v1355 = vld [vmem:[%s1315 + $0x9c] sm:$0xf]
        %v1356 = vld [vmem:[%s1315 + $0xa0] sm:$0xf]
        %v1357 = vld [vmem:[%s1315 + $0xa4] sm:$0xf]
        %v1358 = vld [vmem:[%s1315 + $0xa8] sm:$0xf]
        %v1359 = vld [vmem:[%s1315 + $0xac] sm:$0xf]
        %v1360 = vld [vmem:[%s1315 + $0xb0] sm:$0xf]
        %v1361 = vld [vmem:[%s1315 + $0xb4] sm:$0xf]
        %v1362 = vld [vmem:[%s1315 + $0xb8] sm:$0xf]
        %v1363 = vld [vmem:[%s1315 + $0xbc] sm:$0xf]
        %v1396 = vunpack.c.l.b16 %v1281
        %v1397 = vunpack.c.h.b16 %v1281
        %v1398 = vunpack.c.l.b16 %v1282
        %v1399 = vunpack.c.l.b16 %v1283
        %v1400 = vunpack.c.h.b16 %v1283
        %v1401 = vunpack.c.l.b16 %v1284
        %v1402 = vunpack.c.l.b16 %v1285
        %v1403 = vunpack.c.h.b16 %v1285
        %v1404 = vunpack.c.l.b16 %v1286
        %v1405 = vunpack.c.l.b16 %v1287
        %v1406 = vunpack.c.h.b16 %v1287
        %v1407 = vunpack.c.l.b16 %v1288
        %v1408 = vunpack.c.l.b16 %v1289
        %v1409 = vunpack.c.h.b16 %v1289
        %v1410 = vunpack.c.l.b16 %v1290
        %v1411 = vunpack.c.l.b16 %v1291
        %v1412 = vunpack.c.h.b16 %v1291
        %v1413 = vunpack.c.l.b16 %v1292
        %v1414 = vunpack.c.l.b16 %v1293
        %v1415 = vunpack.c.h.b16 %v1293
        %v1416 = vunpack.c.l.b16 %v1294
        %v1417 = vunpack.c.l.b16 %v1295
        %v1418 = vunpack.c.h.b16 %v1295
        %v1419 = vunpack.c.l.b16 %v1296
        %v1420 = vunpack.c.l.b16 %v1297
        %v1421 = vunpack.c.h.b16 %v1297
        %v1422 = vunpack.c.l.b16 %v1298
        %v1423 = vunpack.c.l.b16 %v1299
        %v1424 = vunpack.c.h.b16 %v1299
        %v1425 = vunpack.c.l.b16 %v1300
        %v1426 = vunpack.c.l.b16 %v1301
        %v1427 = vunpack.c.h.b16 %v1301
        %v1428 = vunpack.c.l.b16 %v1302
        %v1429 = vunpack.c.l.b16 %v1303
        %v1430 = vunpack.c.h.b16 %v1303
        %v1431 = vunpack.c.l.b16 %v1304
        %v1432 = vunpack.c.l.b16 %v1305
        %v1433 = vunpack.c.h.b16 %v1305
        %v1434 = vunpack.c.l.b16 %v1306
        %v1435 = vunpack.c.l.b16 %v1307
        %v1436 = vunpack.c.h.b16 %v1307
        %v1437 = vunpack.c.l.b16 %v1308
        %v1438 = vunpack.c.l.b16 %v1309
        %v1439 = vunpack.c.h.b16 %v1309
        %v1440 = vunpack.c.l.b16 %v1310
        %v1441 = vunpack.c.l.b16 %v1311
        %v1442 = vunpack.c.h.b16 %v1311
        %v1443 = vunpack.c.l.b16 %v1312
        %v1444 = vpack.c.b16 %v1399, %v1396
        %v1445 = vpack.c.b16 %v1400, %v1397
        %v1446 = vpack.c.b16 %v1401, %v1398
        %v1447 = vpack.c.b16 %v1405, %v1402
        %v1448 = vpack.c.b16 %v1406, %v1403
        %v1449 = vpack.c.b16 %v1407, %v1404
        %v1450 = vpack.c.b16 %v1411, %v1408
        %v1451 = vpack.c.b16 %v1412, %v1409
        %v1452 = vpack.c.b16 %v1413, %v1410
        %v1453 = vpack.c.b16 %v1417, %v1414
        %v1454 = vpack.c.b16 %v1418, %v1415
        %v1455 = vpack.c.b16 %v1419, %v1416
        %v1456 = vpack.c.b16 %v1423, %v1420
        %v1457 = vpack.c.b16 %v1424, %v1421
        %v1458 = vpack.c.b16 %v1425, %v1422
        %v1459 = vpack.c.b16 %v1429, %v1426
        %v1460 = vpack.c.b16 %v1430, %v1427
        %v1461 = vpack.c.b16 %v1431, %v1428
        %v1462 = vpack.c.b16 %v1435, %v1432
        %v1463 = vpack.c.b16 %v1436, %v1433
        %v1464 = vpack.c.b16 %v1437, %v1434
        %v1465 = vpack.c.b16 %v1441, %v1438
        %v1466 = vpack.c.b16 %v1442, %v1439
        %v1467 = vpack.c.b16 %v1443, %v1440
        %v1540 = vunpack.c.l.b16 %v1316
        %v1541 = vunpack.c.l.b16 %v1317
        %v1542 = vunpack.c.l.b16 %v1318
        %v1543 = vunpack.c.l.b16 %v1319
        %v1544 = vunpack.c.l.b16 %v1320
        %v1545 = vunpack.c.l.b16 %v1321
        %v1546 = vunpack.c.l.b16 %v1322
        %v1547 = vunpack.c.l.b16 %v1323
        %v1548 = vunpack.c.l.b16 %v1324
        %v1549 = vunpack.c.l.b16 %v1325
        %v1550 = vunpack.c.l.b16 %v1326
        %v1551 = vunpack.c.l.b16 %v1327
        %v1552 = vunpack.c.l.b16 %v1328
        %v1553 = vunpack.c.l.b16 %v1329
        %v1554 = vunpack.c.l.b16 %v1330
        %v1555 = vunpack.c.l.b16 %v1331
        %v1556 = vunpack.c.l.b16 %v1332
        %v1557 = vunpack.c.l.b16 %v1333
        %v1558 = vunpack.c.l.b16 %v1334
        %v1559 = vunpack.c.l.b16 %v1335
        %v1560 = vunpack.c.l.b16 %v1336
        %v1561 = vunpack.c.l.b16 %v1337
        %v1562 = vunpack.c.l.b16 %v1338
        %v1563 = vunpack.c.l.b16 %v1339
        %v1564 = vunpack.c.l.b16 %v1340
        %v1565 = vunpack.c.l.b16 %v1341
        %v1566 = vunpack.c.l.b16 %v1342
        %v1567 = vunpack.c.l.b16 %v1343
        %v1568 = vunpack.c.l.b16 %v1344
        %v1569 = vunpack.c.l.b16 %v1345
        %v1570 = vunpack.c.l.b16 %v1346
        %v1571 = vunpack.c.l.b16 %v1347
        %v1572 = vunpack.c.l.b16 %v1348
        %v1573 = vunpack.c.l.b16 %v1349
        %v1574 = vunpack.c.l.b16 %v1350
        %v1575 = vunpack.c.l.b16 %v1351
        %v1576 = vunpack.c.l.b16 %v1352
        %v1577 = vunpack.c.l.b16 %v1353
        %v1578 = vunpack.c.l.b16 %v1354
        %v1579 = vunpack.c.l.b16 %v1355
        %v1580 = vunpack.c.l.b16 %v1356
        %v1581 = vunpack.c.l.b16 %v1357
        %v1582 = vunpack.c.l.b16 %v1358
        %v1583 = vunpack.c.l.b16 %v1359
        %v1584 = vunpack.c.l.b16 %v1360
        %v1585 = vunpack.c.l.b16 %v1361
        %v1586 = vunpack.c.l.b16 %v1362
        %v1587 = vunpack.c.l.b16 %v1363
        %v1588 = vpack.c.b16 %v1541, %v1540
        %v1589 = vpack.c.b16 %v1543, %v1542
        %v1590 = vpack.c.b16 %v1545, %v1544
        %v1591 = vpack.c.b16 %v1547, %v1546
        %v1592 = vpack.c.b16 %v1549, %v1548
        %v1593 = vpack.c.b16 %v1551, %v1550
        %v1594 = vpack.c.b16 %v1553, %v1552
        %v1595 = vpack.c.b16 %v1555, %v1554
        %v1596 = vpack.c.b16 %v1557, %v1556
        %v1597 = vpack.c.b16 %v1559, %v1558
        %v1598 = vpack.c.b16 %v1561, %v1560
        %v1599 = vpack.c.b16 %v1563, %v1562
        %v1600 = vpack.c.b16 %v1565, %v1564
        %v1601 = vpack.c.b16 %v1567, %v1566
        %v1602 = vpack.c.b16 %v1569, %v1568
        %v1603 = vpack.c.b16 %v1571, %v1570
        %v1604 = vpack.c.b16 %v1573, %v1572
        %v1605 = vpack.c.b16 %v1575, %v1574
        %v1606 = vpack.c.b16 %v1577, %v1576
        %v1607 = vpack.c.b16 %v1579, %v1578
        %v1608 = vpack.c.b16 %v1581, %v1580
        %v1609 = vpack.c.b16 %v1583, %v1582
        %v1610 = vpack.c.b16 %v1585, %v1584
        %v1611 = vpack.c.b16 %v1587, %v1586
        %1636 = vmatpush.bf16.msra.mxu0 %v1595
        %1637 = vmatpush.bf16.msra.mxu0 %v1594
        %1638 = vmatpush.bf16.msra.mxu0 %v1593
        %1639 = vmatpush.bf16.msra.mxu0 %v1592
        %1640 = vmatpush.bf16.msra.mxu0 %v1591
        %1641 = vmatpush.bf16.msra.mxu0 %v1590
        %1642 = vmatpush.bf16.msra.mxu0 %v1589
        %1643 = vmatpush.bf16.msra.mxu0 %v1588
        %1644 = vmatmul.bf16.gmra.mxu0 %v1444
        %v1645 = vpop.f32.mrf.mxu0
        %v1646 = vadd.f32 0.0, %v1645
        %v1647 = vpop.f32.mrf.mxu0
        %v1648 = vadd.f32 0.0, %v1647
        %1649 = vmatmul.bf16.gmra.mxu0 %v1447
        %v1650 = vpop.f32.mrf.mxu0
        %v1651 = vadd.f32 0.0, %v1650
        %v1652 = vpop.f32.mrf.mxu0
        %v1653 = vadd.f32 0.0, %v1652
        %1654 = vmatmul.bf16.gmra.mxu0 %v1450
        %v1655 = vpop.f32.mrf.mxu0
        %v1656 = vadd.f32 0.0, %v1655
        %v1657 = vpop.f32.mrf.mxu0
        %v1658 = vadd.f32 0.0, %v1657
        %1659 = vmatmul.bf16.gmra.mxu0 %v1453
        %v1660 = vpop.f32.mrf.mxu0
        %v1661 = vadd.f32 0.0, %v1660
        %v1662 = vpop.f32.mrf.mxu0
        %v1663 = vadd.f32 0.0, %v1662
        %1664 = vmatmul.bf16.gmra.mxu0 %v1456
        %v1665 = vpop.f32.mrf.mxu0
        %v1666 = vadd.f32 0.0, %v1665
        %v1667 = vpop.f32.mrf.mxu0
        %v1668 = vadd.f32 0.0, %v1667
        %1669 = vmatmul.bf16.gmra.mxu0 %v1459
        %v1670 = vpop.f32.mrf.mxu0
        %v1671 = vadd.f32 0.0, %v1670
        %v1672 = vpop.f32.mrf.mxu0
        %v1673 = vadd.f32 0.0, %v1672
        %1674 = vmatmul.bf16.gmra.mxu0 %v1462
        %v1675 = vpop.f32.mrf.mxu0
        %v1676 = vadd.f32 0.0, %v1675
        %v1677 = vpop.f32.mrf.mxu0
        %v1678 = vadd.f32 0.0, %v1677
        %1679 = vmatmul.bf16.gmra.mxu0 %v1465
        %v1680 = vpop.f32.mrf.mxu0
        %v1681 = vadd.f32 0.0, %v1680
        %v1682 = vpop.f32.mrf.mxu0
        %v1683 = vadd.f32 0.0, %v1682
        %1684 = vdwg.mxu0
        %1685 = vmatpush.bf16.msra.mxu0 %v1603
        %1686 = vmatpush.bf16.msra.mxu0 %v1602
        %1687 = vmatpush.bf16.msra.mxu0 %v1601
        %1688 = vmatpush.bf16.msra.mxu0 %v1600
        %1689 = vmatpush.bf16.msra.mxu0 %v1599
        %1690 = vmatpush.bf16.msra.mxu0 %v1598
        %1691 = vmatpush.bf16.msra.mxu0 %v1597
        %1692 = vmatpush.bf16.msra.mxu0 %v1596
        %1693 = vmatmul.bf16.gmra.mxu0 %v1445
        %v1694 = vpop.f32.mrf.mxu0
        %v1695 = vadd.f32 %v1646, %v1694
        %v1696 = vpop.f32.mrf.mxu0
        %v1697 = vadd.f32 %v1648, %v1696
        %1698 = vmatmul.bf16.gmra.mxu0 %v1448
        %v1699 = vpop.f32.mrf.mxu0
        %v1700 = vadd.f32 %v1651, %v1699
        %v1701 = vpop.f32.mrf.mxu0
        %v1702 = vadd.f32 %v1653, %v1701
        %1703 = vmatmul.bf16.gmra.mxu0 %v1451
        %v1704 = vpop.f32.mrf.mxu0
        %v1705 = vadd.f32 %v1656, %v1704
        %v1706 = vpop.f32.mrf.mxu0
        %v1707 = vadd.f32 %v1658, %v1706
        %1708 = vmatmul.bf16.gmra.mxu0 %v1454
        %v1709 = vpop.f32.mrf.mxu0
        %v1710 = vadd.f32 %v1661, %v1709
        %v1711 = vpop.f32.mrf.mxu0
        %v1712 = vadd.f32 %v1663, %v1711
        %1713 = vmatmul.bf16.gmra.mxu0 %v1457
        %v1714 = vpop.f32.mrf.mxu0
        %v1715 = vadd.f32 %v1666, %v1714
        %v1716 = vpop.f32.mrf.mxu0
        %v1717 = vadd.f32 %v1668, %v1716
        %1718 = vmatmul.bf16.gmra.mxu0 %v1460
        %v1719 = vpop.f32.mrf.mxu0
        %v1720 = vadd.f32 %v1671, %v1719
        %v1721 = vpop.f32.mrf.mxu0
        %v1722 = vadd.f32 %v1673, %v1721
        %1723 = vmatmul.bf16.gmra.mxu0 %v1463
        %v1724 = vpop.f32.mrf.mxu0
        %v1725 = vadd.f32 %v1676, %v1724
        %v1726 = vpop.f32.mrf.mxu0
        %v1727 = vadd.f32 %v1678, %v1726
        %1728 = vmatmul.bf16.gmra.mxu0 %v1466
        %v1729 = vpop.f32.mrf.mxu0
        %v1730 = vadd.f32 %v1681, %v1729
        %v1731 = vpop.f32.mrf.mxu0
        %v1732 = vadd.f32 %v1683, %v1731
        %1733 = vdwg.mxu0
        %1734 = vmatpush.bf16.msra.mxu0 %v1611
        %1735 = vmatpush.bf16.msra.mxu0 %v1610
        %1736 = vmatpush.bf16.msra.mxu0 %v1609
        %1737 = vmatpush.bf16.msra.mxu0 %v1608
        %1738 = vmatpush.bf16.msra.mxu0 %v1607
        %1739 = vmatpush.bf16.msra.mxu0 %v1606
        %1740 = vmatpush.bf16.msra.mxu0 %v1605
        %1741 = vmatpush.bf16.msra.mxu0 %v1604
        %1742 = vmatmul.bf16.gmra.mxu0 %v1446
        %v1743 = vpop.f32.mrf.mxu0
        %v1744 = vadd.f32 %v1695, %v1743
        %v1745 = vpop.f32.mrf.mxu0
        %v1746 = vadd.f32 %v1697, %v1745
        %1747 = vmatmul.bf16.gmra.mxu0 %v1449
        %v1748 = vpop.f32.mrf.mxu0
        %v1749 = vadd.f32 %v1700, %v1748
        %v1750 = vpop.f32.mrf.mxu0
        %v1751 = vadd.f32 %v1702, %v1750
        %1752 = vmatmul.bf16.gmra.mxu0 %v1452
        %v1753 = vpop.f32.mrf.mxu0
        %v1754 = vadd.f32 %v1705, %v1753
        %v1755 = vpop.f32.mrf.mxu0
        %v1756 = vadd.f32 %v1707, %v1755
        %1757 = vmatmul.bf16.gmra.mxu0 %v1455
        %v1758 = vpop.f32.mrf.mxu0
        %v1759 = vadd.f32 %v1710, %v1758
        %v1760 = vpop.f32.mrf.mxu0
        %v1761 = vadd.f32 %v1712, %v1760
        %1762 = vmatmul.bf16.gmra.mxu0 %v1458
        %v1763 = vpop.f32.mrf.mxu0
        %v1764 = vadd.f32 %v1715, %v1763
        %v1765 = vpop.f32.mrf.mxu0
        %v1766 = vadd.f32 %v1717, %v1765
        %1767 = vmatmul.bf16.gmra.mxu0 %v1461
        %v1768 = vpop.f32.mrf.mxu0
        %v1769 = vadd.f32 %v1720, %v1768
        %v1770 = vpop.f32.mrf.mxu0
        %v1771 = vadd.f32 %v1722, %v1770
        %1772 = vmatmul.bf16.gmra.mxu0 %v1464
        %v1773 = vpop.f32.mrf.mxu0
        %v1774 = vadd.f32 %v1725, %v1773
        %v1775 = vpop.f32.mrf.mxu0
        %v1776 = vadd.f32 %v1727, %v1775
        %1777 = vmatmul.bf16.gmra.mxu0 %v1467
        %v1778 = vpop.f32.mrf.mxu0
        %v1779 = vadd.f32 %v1730, %v1778
        %v1780 = vpop.f32.mrf.mxu0
        %v1781 = vadd.f32 %v1732, %v1780
        %1782 = vdwg.mxu0
        %v1783 = vadd.f32 %v1265, %v1744
        %v1784 = vadd.f32 %v1266, %v1746
        %v1785 = vadd.f32 %v1267, %v1749
        %v1786 = vadd.f32 %v1268, %v1751
        %v1787 = vadd.f32 %v1269, %v1754
        %v1788 = vadd.f32 %v1270, %v1756
        %v1789 = vadd.f32 %v1271, %v1759
        %v1790 = vadd.f32 %v1272, %v1761
        %v1791 = vadd.f32 %v1273, %v1764
        %v1792 = vadd.f32 %v1274, %v1766
        %v1793 = vadd.f32 %v1275, %v1769
        %v1794 = vadd.f32 %v1276, %v1771
        %v1795 = vadd.f32 %v1277, %v1774
        %v1796 = vadd.f32 %v1278, %v1776
        %v1797 = vadd.f32 %v1279, %v1779
        %v1798 = vadd.f32 %v1280, %v1781
        %v1799 = vld [vmem:[%s185 + $0x24] sm:$0xff]
        %v1800 = vld [vmem:[%s185 + $0x2c] sm:$0xf]
        %v1801 = vld [vmem:[%s185 + $0x60] sm:$0xff]
        %v1802 = vld [vmem:[%s185 + $0x68] sm:$0xf]
        %v1803 = vld [vmem:[%s185 + $0x9c] sm:$0xff]
        %v1804 = vld [vmem:[%s185 + $0xa4] sm:$0xf]
        %v1805 = vld [vmem:[%s185 + $0xd8] sm:$0xff]
        %v1806 = vld [vmem:[%s185 + $0xe0] sm:$0xf]
        %v1807 = vld [vmem:[%s185 + $0x114] sm:$0xff]
        %v1808 = vld [vmem:[%s185 + $0x11c] sm:$0xf]
        %v1809 = vld [vmem:[%s185 + $0x150] sm:$0xff]
        %v1810 = vld [vmem:[%s185 + $0x158] sm:$0xf]
        %v1811 = vld [vmem:[%s185 + $0x18c] sm:$0xff]
        %v1812 = vld [vmem:[%s185 + $0x194] sm:$0xf]
        %v1813 = vld [vmem:[%s185 + $0x1c8] sm:$0xff]
        %v1814 = vld [vmem:[%s185 + $0x1d0] sm:$0xf]
        %v1815 = vld [vmem:[%s185 + $0x204] sm:$0xff]
        %v1816 = vld [vmem:[%s185 + $0x20c] sm:$0xf]
        %v1817 = vld [vmem:[%s185 + $0x240] sm:$0xff]
        %v1818 = vld [vmem:[%s185 + $0x248] sm:$0xf]
        %v1819 = vld [vmem:[%s185 + $0x27c] sm:$0xff]
        %v1820 = vld [vmem:[%s185 + $0x284] sm:$0xf]
        %v1821 = vld [vmem:[%s185 + $0x2b8] sm:$0xff]
        %v1822 = vld [vmem:[%s185 + $0x2c0] sm:$0xf]
        %v1823 = vld [vmem:[%s185 + $0x2f4] sm:$0xff]
        %v1824 = vld [vmem:[%s185 + $0x2fc] sm:$0xf]
        %v1825 = vld [vmem:[%s185 + $0x330] sm:$0xff]
        %v1826 = vld [vmem:[%s185 + $0x338] sm:$0xf]
        %v1827 = vld [vmem:[%s185 + $0x36c] sm:$0xff]
        %v1828 = vld [vmem:[%s185 + $0x374] sm:$0xf]
        %v1829 = vld [vmem:[%s185 + $0x3a8] sm:$0xff]
        %v1830 = vld [vmem:[%s185 + $0x3b0] sm:$0xf]
        %s1831 = sadd.s32 %s276, 192
        %s1832 = smul.addr %s1831, 4
        %s1833 = scalar_lea.vmem %s2, %s1832
        %v1834 = vld [vmem:[%s1833] sm:$0xf]
        %v1835 = vld [vmem:[%s1833 + $0x4] sm:$0xf]
        %v1836 = vld [vmem:[%s1833 + $0x8] sm:$0xf]
        %v1837 = vld [vmem:[%s1833 + $0xc] sm:$0xf]
        %v1838 = vld [vmem:[%s1833 + $0x10] sm:$0xf]
        %v1839 = vld [vmem:[%s1833 + $0x14] sm:$0xf]
        %v1840 = vld [vmem:[%s1833 + $0x18] sm:$0xf]
        %v1841 = vld [vmem:[%s1833 + $0x1c] sm:$0xf]
        %v1842 = vld [vmem:[%s1833 + $0x20] sm:$0xf]
        %v1843 = vld [vmem:[%s1833 + $0x24] sm:$0xf]
        %v1844 = vld [vmem:[%s1833 + $0x28] sm:$0xf]
        %v1845 = vld [vmem:[%s1833 + $0x2c] sm:$0xf]
        %v1846 = vld [vmem:[%s1833 + $0x30] sm:$0xf]
        %v1847 = vld [vmem:[%s1833 + $0x34] sm:$0xf]
        %v1848 = vld [vmem:[%s1833 + $0x38] sm:$0xf]
        %v1849 = vld [vmem:[%s1833 + $0x3c] sm:$0xf]
        %v1850 = vld [vmem:[%s1833 + $0x40] sm:$0xf]
        %v1851 = vld [vmem:[%s1833 + $0x44] sm:$0xf]
        %v1852 = vld [vmem:[%s1833 + $0x48] sm:$0xf]
        %v1853 = vld [vmem:[%s1833 + $0x4c] sm:$0xf]
        %v1854 = vld [vmem:[%s1833 + $0x50] sm:$0xf]
        %v1855 = vld [vmem:[%s1833 + $0x54] sm:$0xf]
        %v1856 = vld [vmem:[%s1833 + $0x58] sm:$0xf]
        %v1857 = vld [vmem:[%s1833 + $0x5c] sm:$0xf]
        %v1858 = vld [vmem:[%s1833 + $0x60] sm:$0xf]
        %v1859 = vld [vmem:[%s1833 + $0x64] sm:$0xf]
        %v1860 = vld [vmem:[%s1833 + $0x68] sm:$0xf]
        %v1861 = vld [vmem:[%s1833 + $0x6c] sm:$0xf]
        %v1862 = vld [vmem:[%s1833 + $0x70] sm:$0xf]
        %v1863 = vld [vmem:[%s1833 + $0x74] sm:$0xf]
        %v1864 = vld [vmem:[%s1833 + $0x78] sm:$0xf]
        %v1865 = vld [vmem:[%s1833 + $0x7c] sm:$0xf]
        %v1866 = vld [vmem:[%s1833 + $0x80] sm:$0xf]
        %v1867 = vld [vmem:[%s1833 + $0x84] sm:$0xf]
        %v1868 = vld [vmem:[%s1833 + $0x88] sm:$0xf]
        %v1869 = vld [vmem:[%s1833 + $0x8c] sm:$0xf]
        %v1870 = vld [vmem:[%s1833 + $0x90] sm:$0xf]
        %v1871 = vld [vmem:[%s1833 + $0x94] sm:$0xf]
        %v1872 = vld [vmem:[%s1833 + $0x98] sm:$0xf]
        %v1873 = vld [vmem:[%s1833 + $0x9c] sm:$0xf]
        %v1874 = vld [vmem:[%s1833 + $0xa0] sm:$0xf]
        %v1875 = vld [vmem:[%s1833 + $0xa4] sm:$0xf]
        %v1876 = vld [vmem:[%s1833 + $0xa8] sm:$0xf]
        %v1877 = vld [vmem:[%s1833 + $0xac] sm:$0xf]
        %v1878 = vld [vmem:[%s1833 + $0xb0] sm:$0xf]
        %v1879 = vld [vmem:[%s1833 + $0xb4] sm:$0xf]
        %v1880 = vld [vmem:[%s1833 + $0xb8] sm:$0xf]
        %v1881 = vld [vmem:[%s1833 + $0xbc] sm:$0xf]
        %v1914 = vunpack.c.l.b16 %v1799
        %v1915 = vunpack.c.h.b16 %v1799
        %v1916 = vunpack.c.l.b16 %v1800
        %v1917 = vunpack.c.l.b16 %v1801
        %v1918 = vunpack.c.h.b16 %v1801
        %v1919 = vunpack.c.l.b16 %v1802
        %v1920 = vunpack.c.l.b16 %v1803
        %v1921 = vunpack.c.h.b16 %v1803
        %v1922 = vunpack.c.l.b16 %v1804
        %v1923 = vunpack.c.l.b16 %v1805
        %v1924 = vunpack.c.h.b16 %v1805
        %v1925 = vunpack.c.l.b16 %v1806
        %v1926 = vunpack.c.l.b16 %v1807
        %v1927 = vunpack.c.h.b16 %v1807
        %v1928 = vunpack.c.l.b16 %v1808
        %v1929 = vunpack.c.l.b16 %v1809
        %v1930 = vunpack.c.h.b16 %v1809
        %v1931 = vunpack.c.l.b16 %v1810
        %v1932 = vunpack.c.l.b16 %v1811
        %v1933 = vunpack.c.h.b16 %v1811
        %v1934 = vunpack.c.l.b16 %v1812
        %v1935 = vunpack.c.l.b16 %v1813
        %v1936 = vunpack.c.h.b16 %v1813
        %v1937 = vunpack.c.l.b16 %v1814
        %v1938 = vunpack.c.l.b16 %v1815
        %v1939 = vunpack.c.h.b16 %v1815
        %v1940 = vunpack.c.l.b16 %v1816
        %v1941 = vunpack.c.l.b16 %v1817
        %v1942 = vunpack.c.h.b16 %v1817
        %v1943 = vunpack.c.l.b16 %v1818
        %v1944 = vunpack.c.l.b16 %v1819
        %v1945 = vunpack.c.h.b16 %v1819
        %v1946 = vunpack.c.l.b16 %v1820
        %v1947 = vunpack.c.l.b16 %v1821
        %v1948 = vunpack.c.h.b16 %v1821
        %v1949 = vunpack.c.l.b16 %v1822
        %v1950 = vunpack.c.l.b16 %v1823
        %v1951 = vunpack.c.h.b16 %v1823
        %v1952 = vunpack.c.l.b16 %v1824
        %v1953 = vunpack.c.l.b16 %v1825
        %v1954 = vunpack.c.h.b16 %v1825
        %v1955 = vunpack.c.l.b16 %v1826
        %v1956 = vunpack.c.l.b16 %v1827
        %v1957 = vunpack.c.h.b16 %v1827
        %v1958 = vunpack.c.l.b16 %v1828
        %v1959 = vunpack.c.l.b16 %v1829
        %v1960 = vunpack.c.h.b16 %v1829
        %v1961 = vunpack.c.l.b16 %v1830
        %v1962 = vpack.c.b16 %v1917, %v1914
        %v1963 = vpack.c.b16 %v1918, %v1915
        %v1964 = vpack.c.b16 %v1919, %v1916
        %v1965 = vpack.c.b16 %v1923, %v1920
        %v1966 = vpack.c.b16 %v1924, %v1921
        %v1967 = vpack.c.b16 %v1925, %v1922
        %v1968 = vpack.c.b16 %v1929, %v1926
        %v1969 = vpack.c.b16 %v1930, %v1927
        %v1970 = vpack.c.b16 %v1931, %v1928
        %v1971 = vpack.c.b16 %v1935, %v1932
        %v1972 = vpack.c.b16 %v1936, %v1933
        %v1973 = vpack.c.b16 %v1937, %v1934
        %v1974 = vpack.c.b16 %v1941, %v1938
        %v1975 = vpack.c.b16 %v1942, %v1939
        %v1976 = vpack.c.b16 %v1943, %v1940
        %v1977 = vpack.c.b16 %v1947, %v1944
        %v1978 = vpack.c.b16 %v1948, %v1945
        %v1979 = vpack.c.b16 %v1949, %v1946
        %v1980 = vpack.c.b16 %v1953, %v1950
        %v1981 = vpack.c.b16 %v1954, %v1951
        %v1982 = vpack.c.b16 %v1955, %v1952
        %v1983 = vpack.c.b16 %v1959, %v1956
        %v1984 = vpack.c.b16 %v1960, %v1957
        %v1985 = vpack.c.b16 %v1961, %v1958
        %v2058 = vunpack.c.l.b16 %v1834
        %v2059 = vunpack.c.l.b16 %v1835
        %v2060 = vunpack.c.l.b16 %v1836
        %v2061 = vunpack.c.l.b16 %v1837
        %v2062 = vunpack.c.l.b16 %v1838
        %v2063 = vunpack.c.l.b16 %v1839
        %v2064 = vunpack.c.l.b16 %v1840
        %v2065 = vunpack.c.l.b16 %v1841
        %v2066 = vunpack.c.l.b16 %v1842
        %v2067 = vunpack.c.l.b16 %v1843
        %v2068 = vunpack.c.l.b16 %v1844
        %v2069 = vunpack.c.l.b16 %v1845
        %v2070 = vunpack.c.l.b16 %v1846
        %v2071 = vunpack.c.l.b16 %v1847
        %v2072 = vunpack.c.l.b16 %v1848
        %v2073 = vunpack.c.l.b16 %v1849
        %v2074 = vunpack.c.l.b16 %v1850
        %v2075 = vunpack.c.l.b16 %v1851
        %v2076 = vunpack.c.l.b16 %v1852
        %v2077 = vunpack.c.l.b16 %v1853
        %v2078 = vunpack.c.l.b16 %v1854
        %v2079 = vunpack.c.l.b16 %v1855
        %v2080 = vunpack.c.l.b16 %v1856
        %v2081 = vunpack.c.l.b16 %v1857
        %v2082 = vunpack.c.l.b16 %v1858
        %v2083 = vunpack.c.l.b16 %v1859
        %v2084 = vunpack.c.l.b16 %v1860
        %v2085 = vunpack.c.l.b16 %v1861
        %v2086 = vunpack.c.l.b16 %v1862
        %v2087 = vunpack.c.l.b16 %v1863
        %v2088 = vunpack.c.l.b16 %v1864
        %v2089 = vunpack.c.l.b16 %v1865
        %v2090 = vunpack.c.l.b16 %v1866
        %v2091 = vunpack.c.l.b16 %v1867
        %v2092 = vunpack.c.l.b16 %v1868
        %v2093 = vunpack.c.l.b16 %v1869
        %v2094 = vunpack.c.l.b16 %v1870
        %v2095 = vunpack.c.l.b16 %v1871
        %v2096 = vunpack.c.l.b16 %v1872
        %v2097 = vunpack.c.l.b16 %v1873
        %v2098 = vunpack.c.l.b16 %v1874
        %v2099 = vunpack.c.l.b16 %v1875
        %v2100 = vunpack.c.l.b16 %v1876
        %v2101 = vunpack.c.l.b16 %v1877
        %v2102 = vunpack.c.l.b16 %v1878
        %v2103 = vunpack.c.l.b16 %v1879
        %v2104 = vunpack.c.l.b16 %v1880
        %v2105 = vunpack.c.l.b16 %v1881
        %v2106 = vpack.c.b16 %v2059, %v2058
        %v2107 = vpack.c.b16 %v2061, %v2060
        %v2108 = vpack.c.b16 %v2063, %v2062
        %v2109 = vpack.c.b16 %v2065, %v2064
        %v2110 = vpack.c.b16 %v2067, %v2066
        %v2111 = vpack.c.b16 %v2069, %v2068
        %v2112 = vpack.c.b16 %v2071, %v2070
        %v2113 = vpack.c.b16 %v2073, %v2072
        %v2114 = vpack.c.b16 %v2075, %v2074
        %v2115 = vpack.c.b16 %v2077, %v2076
        %v2116 = vpack.c.b16 %v2079, %v2078
        %v2117 = vpack.c.b16 %v2081, %v2080
        %v2118 = vpack.c.b16 %v2083, %v2082
        %v2119 = vpack.c.b16 %v2085, %v2084
        %v2120 = vpack.c.b16 %v2087, %v2086
        %v2121 = vpack.c.b16 %v2089, %v2088
        %v2122 = vpack.c.b16 %v2091, %v2090
        %v2123 = vpack.c.b16 %v2093, %v2092
        %v2124 = vpack.c.b16 %v2095, %v2094
        %v2125 = vpack.c.b16 %v2097, %v2096
        %v2126 = vpack.c.b16 %v2099, %v2098
        %v2127 = vpack.c.b16 %v2101, %v2100
        %v2128 = vpack.c.b16 %v2103, %v2102
        %v2129 = vpack.c.b16 %v2105, %v2104
        %2154 = vmatpush.bf16.msra.mxu0 %v2113
        %2155 = vmatpush.bf16.msra.mxu0 %v2112
        %2156 = vmatpush.bf16.msra.mxu0 %v2111
        %2157 = vmatpush.bf16.msra.mxu0 %v2110
        %2158 = vmatpush.bf16.msra.mxu0 %v2109
        %2159 = vmatpush.bf16.msra.mxu0 %v2108
        %2160 = vmatpush.bf16.msra.mxu0 %v2107
        %2161 = vmatpush.bf16.msra.mxu0 %v2106
        %2162 = vmatmul.bf16.gmra.mxu0 %v1962
        %v2163 = vpop.f32.mrf.mxu0
        %v2164 = vadd.f32 0.0, %v2163
        %v2165 = vpop.f32.mrf.mxu0
        %v2166 = vadd.f32 0.0, %v2165
        %2167 = vmatmul.bf16.gmra.mxu0 %v1965
        %v2168 = vpop.f32.mrf.mxu0
        %v2169 = vadd.f32 0.0, %v2168
        %v2170 = vpop.f32.mrf.mxu0
        %v2171 = vadd.f32 0.0, %v2170
        %2172 = vmatmul.bf16.gmra.mxu0 %v1968
        %v2173 = vpop.f32.mrf.mxu0
        %v2174 = vadd.f32 0.0, %v2173
        %v2175 = vpop.f32.mrf.mxu0
        %v2176 = vadd.f32 0.0, %v2175
        %2177 = vmatmul.bf16.gmra.mxu0 %v1971
        %v2178 = vpop.f32.mrf.mxu0
        %v2179 = vadd.f32 0.0, %v2178
        %v2180 = vpop.f32.mrf.mxu0
        %v2181 = vadd.f32 0.0, %v2180
        %2182 = vmatmul.bf16.gmra.mxu0 %v1974
        %v2183 = vpop.f32.mrf.mxu0
        %v2184 = vadd.f32 0.0, %v2183
        %v2185 = vpop.f32.mrf.mxu0
        %v2186 = vadd.f32 0.0, %v2185
        %2187 = vmatmul.bf16.gmra.mxu0 %v1977
        %v2188 = vpop.f32.mrf.mxu0
        %v2189 = vadd.f32 0.0, %v2188
        %v2190 = vpop.f32.mrf.mxu0
        %v2191 = vadd.f32 0.0, %v2190
        %2192 = vmatmul.bf16.gmra.mxu0 %v1980
        %v2193 = vpop.f32.mrf.mxu0
        %v2194 = vadd.f32 0.0, %v2193
        %v2195 = vpop.f32.mrf.mxu0
        %v2196 = vadd.f32 0.0, %v2195
        %2197 = vmatmul.bf16.gmra.mxu0 %v1983
        %v2198 = vpop.f32.mrf.mxu0
        %v2199 = vadd.f32 0.0, %v2198
        %v2200 = vpop.f32.mrf.mxu0
        %v2201 = vadd.f32 0.0, %v2200
        %2202 = vdwg.mxu0
        %2203 = vmatpush.bf16.msra.mxu0 %v2121
        %2204 = vmatpush.bf16.msra.mxu0 %v2120
        %2205 = vmatpush.bf16.msra.mxu0 %v2119
        %2206 = vmatpush.bf16.msra.mxu0 %v2118
        %2207 = vmatpush.bf16.msra.mxu0 %v2117
        %2208 = vmatpush.bf16.msra.mxu0 %v2116
        %2209 = vmatpush.bf16.msra.mxu0 %v2115
        %2210 = vmatpush.bf16.msra.mxu0 %v2114
        %2211 = vmatmul.bf16.gmra.mxu0 %v1963
        %v2212 = vpop.f32.mrf.mxu0
        %v2213 = vadd.f32 %v2164, %v2212
        %v2214 = vpop.f32.mrf.mxu0
        %v2215 = vadd.f32 %v2166, %v2214
        %2216 = vmatmul.bf16.gmra.mxu0 %v1966
        %v2217 = vpop.f32.mrf.mxu0
        %v2218 = vadd.f32 %v2169, %v2217
        %v2219 = vpop.f32.mrf.mxu0
        %v2220 = vadd.f32 %v2171, %v2219
        %2221 = vmatmul.bf16.gmra.mxu0 %v1969
        %v2222 = vpop.f32.mrf.mxu0
        %v2223 = vadd.f32 %v2174, %v2222
        %v2224 = vpop.f32.mrf.mxu0
        %v2225 = vadd.f32 %v2176, %v2224
        %2226 = vmatmul.bf16.gmra.mxu0 %v1972
        %v2227 = vpop.f32.mrf.mxu0
        %v2228 = vadd.f32 %v2179, %v2227
        %v2229 = vpop.f32.mrf.mxu0
        %v2230 = vadd.f32 %v2181, %v2229
        %2231 = vmatmul.bf16.gmra.mxu0 %v1975
        %v2232 = vpop.f32.mrf.mxu0
        %v2233 = vadd.f32 %v2184, %v2232
        %v2234 = vpop.f32.mrf.mxu0
        %v2235 = vadd.f32 %v2186, %v2234
        %2236 = vmatmul.bf16.gmra.mxu0 %v1978
        %v2237 = vpop.f32.mrf.mxu0
        %v2238 = vadd.f32 %v2189, %v2237
        %v2239 = vpop.f32.mrf.mxu0
        %v2240 = vadd.f32 %v2191, %v2239
        %2241 = vmatmul.bf16.gmra.mxu0 %v1981
        %v2242 = vpop.f32.mrf.mxu0
        %v2243 = vadd.f32 %v2194, %v2242
        %v2244 = vpop.f32.mrf.mxu0
        %v2245 = vadd.f32 %v2196, %v2244
        %2246 = vmatmul.bf16.gmra.mxu0 %v1984
        %v2247 = vpop.f32.mrf.mxu0
        %v2248 = vadd.f32 %v2199, %v2247
        %v2249 = vpop.f32.mrf.mxu0
        %v2250 = vadd.f32 %v2201, %v2249
        %2251 = vdwg.mxu0
        %2252 = vmatpush.bf16.msra.mxu0 %v2129
        %2253 = vmatpush.bf16.msra.mxu0 %v2128
        %2254 = vmatpush.bf16.msra.mxu0 %v2127
        %2255 = vmatpush.bf16.msra.mxu0 %v2126
        %2256 = vmatpush.bf16.msra.mxu0 %v2125
        %2257 = vmatpush.bf16.msra.mxu0 %v2124
        %2258 = vmatpush.bf16.msra.mxu0 %v2123
        %2259 = vmatpush.bf16.msra.mxu0 %v2122
        %2260 = vmatmul.bf16.gmra.mxu0 %v1964
        %v2261 = vpop.f32.mrf.mxu0
        %v2262 = vadd.f32 %v2213, %v2261
        %v2263 = vpop.f32.mrf.mxu0
        %v2264 = vadd.f32 %v2215, %v2263
        %2265 = vmatmul.bf16.gmra.mxu0 %v1967
        %v2266 = vpop.f32.mrf.mxu0
        %v2267 = vadd.f32 %v2218, %v2266
        %v2268 = vpop.f32.mrf.mxu0
        %v2269 = vadd.f32 %v2220, %v2268
        %2270 = vmatmul.bf16.gmra.mxu0 %v1970
        %v2271 = vpop.f32.mrf.mxu0
        %v2272 = vadd.f32 %v2223, %v2271
        %v2273 = vpop.f32.mrf.mxu0
        %v2274 = vadd.f32 %v2225, %v2273
        %2275 = vmatmul.bf16.gmra.mxu0 %v1973
        %v2276 = vpop.f32.mrf.mxu0
        %v2277 = vadd.f32 %v2228, %v2276
        %v2278 = vpop.f32.mrf.mxu0
        %v2279 = vadd.f32 %v2230, %v2278
        %2280 = vmatmul.bf16.gmra.mxu0 %v1976
        %v2281 = vpop.f32.mrf.mxu0
        %v2282 = vadd.f32 %v2233, %v2281
        %v2283 = vpop.f32.mrf.mxu0
        %v2284 = vadd.f32 %v2235, %v2283
        %2285 = vmatmul.bf16.gmra.mxu0 %v1979
        %v2286 = vpop.f32.mrf.mxu0
        %v2287 = vadd.f32 %v2238, %v2286
        %v2288 = vpop.f32.mrf.mxu0
        %v2289 = vadd.f32 %v2240, %v2288
        %2290 = vmatmul.bf16.gmra.mxu0 %v1982
        %v2291 = vpop.f32.mrf.mxu0
        %v2292 = vadd.f32 %v2243, %v2291
        %v2293 = vpop.f32.mrf.mxu0
        %v2294 = vadd.f32 %v2245, %v2293
        %2295 = vmatmul.bf16.gmra.mxu0 %v1985
        %v2296 = vpop.f32.mrf.mxu0
        %v2297 = vadd.f32 %v2248, %v2296
        %v2298 = vpop.f32.mrf.mxu0
        %v2299 = vadd.f32 %v2250, %v2298
        %2300 = vdwg.mxu0
        %v2301 = vadd.f32 %v1783, %v2262
        %v2302 = vadd.f32 %v1784, %v2264
        %v2303 = vadd.f32 %v1785, %v2267
        %v2304 = vadd.f32 %v1786, %v2269
        %v2305 = vadd.f32 %v1787, %v2272
        %v2306 = vadd.f32 %v1788, %v2274
        %v2307 = vadd.f32 %v1789, %v2277
        %v2308 = vadd.f32 %v1790, %v2279
        %v2309 = vadd.f32 %v1791, %v2282
        %v2310 = vadd.f32 %v1792, %v2284
        %v2311 = vadd.f32 %v1793, %v2287
        %v2312 = vadd.f32 %v1794, %v2289
        %v2313 = vadd.f32 %v1795, %v2292
        %v2314 = vadd.f32 %v1796, %v2294
        %v2315 = vadd.f32 %v1797, %v2297
        %v2316 = vadd.f32 %v1798, %v2299
        %v2317 = vld [vmem:[%s185 + $0x30] sm:$0xff]
        %v2318 = vld [vmem:[%s185 + $0x38] sm:$0xf]
        %v2319 = vld [vmem:[%s185 + $0x6c] sm:$0xff]
        %v2320 = vld [vmem:[%s185 + $0x74] sm:$0xf]
        %v2321 = vld [vmem:[%s185 + $0xa8] sm:$0xff]
        %v2322 = vld [vmem:[%s185 + $0xb0] sm:$0xf]
        %v2323 = vld [vmem:[%s185 + $0xe4] sm:$0xff]
        %v2324 = vld [vmem:[%s185 + $0xec] sm:$0xf]
        %v2325 = vld [vmem:[%s185 + $0x120] sm:$0xff]
        %v2326 = vld [vmem:[%s185 + $0x128] sm:$0xf]
        %v2327 = vld [vmem:[%s185 + $0x15c] sm:$0xff]
        %v2328 = vld [vmem:[%s185 + $0x164] sm:$0xf]
        %v2329 = vld [vmem:[%s185 + $0x198] sm:$0xff]
        %v2330 = vld [vmem:[%s185 + $0x1a0] sm:$0xf]
        %v2331 = vld [vmem:[%s185 + $0x1d4] sm:$0xff]
        %v2332 = vld [vmem:[%s185 + $0x1dc] sm:$0xf]
        %v2333 = vld [vmem:[%s185 + $0x210] sm:$0xff]
        %v2334 = vld [vmem:[%s185 + $0x218] sm:$0xf]
        %v2335 = vld [vmem:[%s185 + $0x24c] sm:$0xff]
        %v2336 = vld [vmem:[%s185 + $0x254] sm:$0xf]
        %v2337 = vld [vmem:[%s185 + $0x288] sm:$0xff]
        %v2338 = vld [vmem:[%s185 + $0x290] sm:$0xf]
        %v2339 = vld [vmem:[%s185 + $0x2c4] sm:$0xff]
        %v2340 = vld [vmem:[%s185 + $0x2cc] sm:$0xf]
        %v2341 = vld [vmem:[%s185 + $0x300] sm:$0xff]
        %v2342 = vld [vmem:[%s185 + $0x308] sm:$0xf]
        %v2343 = vld [vmem:[%s185 + $0x33c] sm:$0xff]
        %v2344 = vld [vmem:[%s185 + $0x344] sm:$0xf]
        %v2345 = vld [vmem:[%s185 + $0x378] sm:$0xff]
        %v2346 = vld [vmem:[%s185 + $0x380] sm:$0xf]
        %v2347 = vld [vmem:[%s185 + $0x3b4] sm:$0xff]
        %v2348 = vld [vmem:[%s185 + $0x3bc] sm:$0xf]
        %s2349 = sadd.s32 %s276, 256
        %s2350 = smul.addr %s2349, 4
        %s2351 = scalar_lea.vmem %s2, %s2350
        %v2352 = vld [vmem:[%s2351] sm:$0xf]
        %v2353 = vld [vmem:[%s2351 + $0x4] sm:$0xf]
        %v2354 = vld [vmem:[%s2351 + $0x8] sm:$0xf]
        %v2355 = vld [vmem:[%s2351 + $0xc] sm:$0xf]
        %v2356 = vld [vmem:[%s2351 + $0x10] sm:$0xf]
        %v2357 = vld [vmem:[%s2351 + $0x14] sm:$0xf]
        %v2358 = vld [vmem:[%s2351 + $0x18] sm:$0xf]
        %v2359 = vld [vmem:[%s2351 + $0x1c] sm:$0xf]
        %v2360 = vld [vmem:[%s2351 + $0x20] sm:$0xf]
        %v2361 = vld [vmem:[%s2351 + $0x24] sm:$0xf]
        %v2362 = vld [vmem:[%s2351 + $0x28] sm:$0xf]
        %v2363 = vld [vmem:[%s2351 + $0x2c] sm:$0xf]
        %v2364 = vld [vmem:[%s2351 + $0x30] sm:$0xf]
        %v2365 = vld [vmem:[%s2351 + $0x34] sm:$0xf]
        %v2366 = vld [vmem:[%s2351 + $0x38] sm:$0xf]
        %v2367 = vld [vmem:[%s2351 + $0x3c] sm:$0xf]
        %v2368 = vld [vmem:[%s2351 + $0x40] sm:$0xf]
        %v2369 = vld [vmem:[%s2351 + $0x44] sm:$0xf]
        %v2370 = vld [vmem:[%s2351 + $0x48] sm:$0xf]
        %v2371 = vld [vmem:[%s2351 + $0x4c] sm:$0xf]
        %v2372 = vld [vmem:[%s2351 + $0x50] sm:$0xf]
        %v2373 = vld [vmem:[%s2351 + $0x54] sm:$0xf]
        %v2374 = vld [vmem:[%s2351 + $0x58] sm:$0xf]
        %v2375 = vld [vmem:[%s2351 + $0x5c] sm:$0xf]
        %v2376 = vld [vmem:[%s2351 + $0x60] sm:$0xf]
        %v2377 = vld [vmem:[%s2351 + $0x64] sm:$0xf]
        %v2378 = vld [vmem:[%s2351 + $0x68] sm:$0xf]
        %v2379 = vld [vmem:[%s2351 + $0x6c] sm:$0xf]
        %v2380 = vld [vmem:[%s2351 + $0x70] sm:$0xf]
        %v2381 = vld [vmem:[%s2351 + $0x74] sm:$0xf]
        %v2382 = vld [vmem:[%s2351 + $0x78] sm:$0xf]
        %v2383 = vld [vmem:[%s2351 + $0x7c] sm:$0xf]
        %v2384 = vld [vmem:[%s2351 + $0x80] sm:$0xf]
        %v2385 = vld [vmem:[%s2351 + $0x84] sm:$0xf]
        %v2386 = vld [vmem:[%s2351 + $0x88] sm:$0xf]
        %v2387 = vld [vmem:[%s2351 + $0x8c] sm:$0xf]
        %v2388 = vld [vmem:[%s2351 + $0x90] sm:$0xf]
        %v2389 = vld [vmem:[%s2351 + $0x94] sm:$0xf]
        %v2390 = vld [vmem:[%s2351 + $0x98] sm:$0xf]
        %v2391 = vld [vmem:[%s2351 + $0x9c] sm:$0xf]
        %v2392 = vld [vmem:[%s2351 + $0xa0] sm:$0xf]
        %v2393 = vld [vmem:[%s2351 + $0xa4] sm:$0xf]
        %v2394 = vld [vmem:[%s2351 + $0xa8] sm:$0xf]
        %v2395 = vld [vmem:[%s2351 + $0xac] sm:$0xf]
        %v2396 = vld [vmem:[%s2351 + $0xb0] sm:$0xf]
        %v2397 = vld [vmem:[%s2351 + $0xb4] sm:$0xf]
        %v2398 = vld [vmem:[%s2351 + $0xb8] sm:$0xf]
        %v2399 = vld [vmem:[%s2351 + $0xbc] sm:$0xf]
        %v2432 = vunpack.c.l.b16 %v2317
        %v2433 = vunpack.c.h.b16 %v2317
        %v2434 = vunpack.c.l.b16 %v2318
        %v2435 = vunpack.c.l.b16 %v2319
        %v2436 = vunpack.c.h.b16 %v2319
        %v2437 = vunpack.c.l.b16 %v2320
        %v2438 = vunpack.c.l.b16 %v2321
        %v2439 = vunpack.c.h.b16 %v2321
        %v2440 = vunpack.c.l.b16 %v2322
        %v2441 = vunpack.c.l.b16 %v2323
        %v2442 = vunpack.c.h.b16 %v2323
        %v2443 = vunpack.c.l.b16 %v2324
        %v2444 = vunpack.c.l.b16 %v2325
        %v2445 = vunpack.c.h.b16 %v2325
        %v2446 = vunpack.c.l.b16 %v2326
        %v2447 = vunpack.c.l.b16 %v2327
        %v2448 = vunpack.c.h.b16 %v2327
        %v2449 = vunpack.c.l.b16 %v2328
        %v2450 = vunpack.c.l.b16 %v2329
        %v2451 = vunpack.c.h.b16 %v2329
        %v2452 = vunpack.c.l.b16 %v2330
        %v2453 = vunpack.c.l.b16 %v2331
        %v2454 = vunpack.c.h.b16 %v2331
        %v2455 = vunpack.c.l.b16 %v2332
        %v2456 = vunpack.c.l.b16 %v2333
        %v2457 = vunpack.c.h.b16 %v2333
        %v2458 = vunpack.c.l.b16 %v2334
        %v2459 = vunpack.c.l.b16 %v2335
        %v2460 = vunpack.c.h.b16 %v2335
        %v2461 = vunpack.c.l.b16 %v2336
        %v2462 = vunpack.c.l.b16 %v2337
        %v2463 = vunpack.c.h.b16 %v2337
        %v2464 = vunpack.c.l.b16 %v2338
        %v2465 = vunpack.c.l.b16 %v2339
        %v2466 = vunpack.c.h.b16 %v2339
        %v2467 = vunpack.c.l.b16 %v2340
        %v2468 = vunpack.c.l.b16 %v2341
        %v2469 = vunpack.c.h.b16 %v2341
        %v2470 = vunpack.c.l.b16 %v2342
        %v2471 = vunpack.c.l.b16 %v2343
        %v2472 = vunpack.c.h.b16 %v2343
        %v2473 = vunpack.c.l.b16 %v2344
        %v2474 = vunpack.c.l.b16 %v2345
        %v2475 = vunpack.c.h.b16 %v2345
        %v2476 = vunpack.c.l.b16 %v2346
        %v2477 = vunpack.c.l.b16 %v2347
        %v2478 = vunpack.c.h.b16 %v2347
        %v2479 = vunpack.c.l.b16 %v2348
        %v2480 = vpack.c.b16 %v2435, %v2432
        %v2481 = vpack.c.b16 %v2436, %v2433
        %v2482 = vpack.c.b16 %v2437, %v2434
        %v2483 = vpack.c.b16 %v2441, %v2438
        %v2484 = vpack.c.b16 %v2442, %v2439
        %v2485 = vpack.c.b16 %v2443, %v2440
        %v2486 = vpack.c.b16 %v2447, %v2444
        %v2487 = vpack.c.b16 %v2448, %v2445
        %v2488 = vpack.c.b16 %v2449, %v2446
        %v2489 = vpack.c.b16 %v2453, %v2450
        %v2490 = vpack.c.b16 %v2454, %v2451
        %v2491 = vpack.c.b16 %v2455, %v2452
        %v2492 = vpack.c.b16 %v2459, %v2456
        %v2493 = vpack.c.b16 %v2460, %v2457
        %v2494 = vpack.c.b16 %v2461, %v2458
        %v2495 = vpack.c.b16 %v2465, %v2462
        %v2496 = vpack.c.b16 %v2466, %v2463
        %v2497 = vpack.c.b16 %v2467, %v2464
        %v2498 = vpack.c.b16 %v2471, %v2468
        %v2499 = vpack.c.b16 %v2472, %v2469
        %v2500 = vpack.c.b16 %v2473, %v2470
        %v2501 = vpack.c.b16 %v2477, %v2474
        %v2502 = vpack.c.b16 %v2478, %v2475
        %v2503 = vpack.c.b16 %v2479, %v2476
        %v2576 = vunpack.c.l.b16 %v2352
        %v2577 = vunpack.c.l.b16 %v2353
        %v2578 = vunpack.c.l.b16 %v2354
        %v2579 = vunpack.c.l.b16 %v2355
        %v2580 = vunpack.c.l.b16 %v2356
        %v2581 = vunpack.c.l.b16 %v2357
        %v2582 = vunpack.c.l.b16 %v2358
        %v2583 = vunpack.c.l.b16 %v2359
        %v2584 = vunpack.c.l.b16 %v2360
        %v2585 = vunpack.c.l.b16 %v2361
        %v2586 = vunpack.c.l.b16 %v2362
        %v2587 = vunpack.c.l.b16 %v2363
        %v2588 = vunpack.c.l.b16 %v2364
        %v2589 = vunpack.c.l.b16 %v2365
        %v2590 = vunpack.c.l.b16 %v2366
        %v2591 = vunpack.c.l.b16 %v2367
        %v2592 = vunpack.c.l.b16 %v2368
        %v2593 = vunpack.c.l.b16 %v2369
        %v2594 = vunpack.c.l.b16 %v2370
        %v2595 = vunpack.c.l.b16 %v2371
        %v2596 = vunpack.c.l.b16 %v2372
        %v2597 = vunpack.c.l.b16 %v2373
        %v2598 = vunpack.c.l.b16 %v2374
        %v2599 = vunpack.c.l.b16 %v2375
        %v2600 = vunpack.c.l.b16 %v2376
        %v2601 = vunpack.c.l.b16 %v2377
        %v2602 = vunpack.c.l.b16 %v2378
        %v2603 = vunpack.c.l.b16 %v2379
        %v2604 = vunpack.c.l.b16 %v2380
        %v2605 = vunpack.c.l.b16 %v2381
        %v2606 = vunpack.c.l.b16 %v2382
        %v2607 = vunpack.c.l.b16 %v2383
        %v2608 = vunpack.c.l.b16 %v2384
        %v2609 = vunpack.c.l.b16 %v2385
        %v2610 = vunpack.c.l.b16 %v2386
        %v2611 = vunpack.c.l.b16 %v2387
        %v2612 = vunpack.c.l.b16 %v2388
        %v2613 = vunpack.c.l.b16 %v2389
        %v2614 = vunpack.c.l.b16 %v2390
        %v2615 = vunpack.c.l.b16 %v2391
        %v2616 = vunpack.c.l.b16 %v2392
        %v2617 = vunpack.c.l.b16 %v2393
        %v2618 = vunpack.c.l.b16 %v2394
        %v2619 = vunpack.c.l.b16 %v2395
        %v2620 = vunpack.c.l.b16 %v2396
        %v2621 = vunpack.c.l.b16 %v2397
        %v2622 = vunpack.c.l.b16 %v2398
        %v2623 = vunpack.c.l.b16 %v2399
        %v2624 = vpack.c.b16 %v2577, %v2576
        %v2625 = vpack.c.b16 %v2579, %v2578
        %v2626 = vpack.c.b16 %v2581, %v2580
        %v2627 = vpack.c.b16 %v2583, %v2582
        %v2628 = vpack.c.b16 %v2585, %v2584
        %v2629 = vpack.c.b16 %v2587, %v2586
        %v2630 = vpack.c.b16 %v2589, %v2588
        %v2631 = vpack.c.b16 %v2591, %v2590
        %v2632 = vpack.c.b16 %v2593, %v2592
        %v2633 = vpack.c.b16 %v2595, %v2594
        %v2634 = vpack.c.b16 %v2597, %v2596
        %v2635 = vpack.c.b16 %v2599, %v2598
        %v2636 = vpack.c.b16 %v2601, %v2600
        %v2637 = vpack.c.b16 %v2603, %v2602
        %v2638 = vpack.c.b16 %v2605, %v2604
        %v2639 = vpack.c.b16 %v2607, %v2606
        %v2640 = vpack.c.b16 %v2609, %v2608
        %v2641 = vpack.c.b16 %v2611, %v2610
        %v2642 = vpack.c.b16 %v2613, %v2612
        %v2643 = vpack.c.b16 %v2615, %v2614
        %v2644 = vpack.c.b16 %v2617, %v2616
        %v2645 = vpack.c.b16 %v2619, %v2618
        %v2646 = vpack.c.b16 %v2621, %v2620
        %v2647 = vpack.c.b16 %v2623, %v2622
        %2672 = vmatpush.bf16.msra.mxu0 %v2631
        %2673 = vmatpush.bf16.msra.mxu0 %v2630
        %2674 = vmatpush.bf16.msra.mxu0 %v2629
        %2675 = vmatpush.bf16.msra.mxu0 %v2628
        %2676 = vmatpush.bf16.msra.mxu0 %v2627
        %2677 = vmatpush.bf16.msra.mxu0 %v2626
        %2678 = vmatpush.bf16.msra.mxu0 %v2625
        %2679 = vmatpush.bf16.msra.mxu0 %v2624
        %2680 = vmatmul.bf16.gmra.mxu0 %v2480
        %v2681 = vpop.f32.mrf.mxu0
        %v2682 = vadd.f32 0.0, %v2681
        %v2683 = vpop.f32.mrf.mxu0
        %v2684 = vadd.f32 0.0, %v2683
        %2685 = vmatmul.bf16.gmra.mxu0 %v2483
        %v2686 = vpop.f32.mrf.mxu0
        %v2687 = vadd.f32 0.0, %v2686
        %v2688 = vpop.f32.mrf.mxu0
        %v2689 = vadd.f32 0.0, %v2688
        %2690 = vmatmul.bf16.gmra.mxu0 %v2486
        %v2691 = vpop.f32.mrf.mxu0
        %v2692 = vadd.f32 0.0, %v2691
        %v2693 = vpop.f32.mrf.mxu0
        %v2694 = vadd.f32 0.0, %v2693
        %2695 = vmatmul.bf16.gmra.mxu0 %v2489
        %v2696 = vpop.f32.mrf.mxu0
        %v2697 = vadd.f32 0.0, %v2696
        %v2698 = vpop.f32.mrf.mxu0
        %v2699 = vadd.f32 0.0, %v2698
        %2700 = vmatmul.bf16.gmra.mxu0 %v2492
        %v2701 = vpop.f32.mrf.mxu0
        %v2702 = vadd.f32 0.0, %v2701
        %v2703 = vpop.f32.mrf.mxu0
        %v2704 = vadd.f32 0.0, %v2703
        %2705 = vmatmul.bf16.gmra.mxu0 %v2495
        %v2706 = vpop.f32.mrf.mxu0
        %v2707 = vadd.f32 0.0, %v2706
        %v2708 = vpop.f32.mrf.mxu0
        %v2709 = vadd.f32 0.0, %v2708
        %2710 = vmatmul.bf16.gmra.mxu0 %v2498
        %v2711 = vpop.f32.mrf.mxu0
        %v2712 = vadd.f32 0.0, %v2711
        %v2713 = vpop.f32.mrf.mxu0
        %v2714 = vadd.f32 0.0, %v2713
        %2715 = vmatmul.bf16.gmra.mxu0 %v2501
        %v2716 = vpop.f32.mrf.mxu0
        %v2717 = vadd.f32 0.0, %v2716
        %v2718 = vpop.f32.mrf.mxu0
        %v2719 = vadd.f32 0.0, %v2718
        %2720 = vdwg.mxu0
        %2721 = vmatpush.bf16.msra.mxu0 %v2639
        %2722 = vmatpush.bf16.msra.mxu0 %v2638
        %2723 = vmatpush.bf16.msra.mxu0 %v2637
        %2724 = vmatpush.bf16.msra.mxu0 %v2636
        %2725 = vmatpush.bf16.msra.mxu0 %v2635
        %2726 = vmatpush.bf16.msra.mxu0 %v2634
        %2727 = vmatpush.bf16.msra.mxu0 %v2633
        %2728 = vmatpush.bf16.msra.mxu0 %v2632
        %2729 = vmatmul.bf16.gmra.mxu0 %v2481
        %v2730 = vpop.f32.mrf.mxu0
        %v2731 = vadd.f32 %v2682, %v2730
        %v2732 = vpop.f32.mrf.mxu0
        %v2733 = vadd.f32 %v2684, %v2732
        %2734 = vmatmul.bf16.gmra.mxu0 %v2484
        %v2735 = vpop.f32.mrf.mxu0
        %v2736 = vadd.f32 %v2687, %v2735
        %v2737 = vpop.f32.mrf.mxu0
        %v2738 = vadd.f32 %v2689, %v2737
        %2739 = vmatmul.bf16.gmra.mxu0 %v2487
        %v2740 = vpop.f32.mrf.mxu0
        %v2741 = vadd.f32 %v2692, %v2740
        %v2742 = vpop.f32.mrf.mxu0
        %v2743 = vadd.f32 %v2694, %v2742
        %2744 = vmatmul.bf16.gmra.mxu0 %v2490
        %v2745 = vpop.f32.mrf.mxu0
        %v2746 = vadd.f32 %v2697, %v2745
        %v2747 = vpop.f32.mrf.mxu0
        %v2748 = vadd.f32 %v2699, %v2747
        %2749 = vmatmul.bf16.gmra.mxu0 %v2493
        %v2750 = vpop.f32.mrf.mxu0
        %v2751 = vadd.f32 %v2702, %v2750
        %v2752 = vpop.f32.mrf.mxu0
        %v2753 = vadd.f32 %v2704, %v2752
        %2754 = vmatmul.bf16.gmra.mxu0 %v2496
        %v2755 = vpop.f32.mrf.mxu0
        %v2756 = vadd.f32 %v2707, %v2755
        %v2757 = vpop.f32.mrf.mxu0
        %v2758 = vadd.f32 %v2709, %v2757
        %2759 = vmatmul.bf16.gmra.mxu0 %v2499
        %v2760 = vpop.f32.mrf.mxu0
        %v2761 = vadd.f32 %v2712, %v2760
        %v2762 = vpop.f32.mrf.mxu0
        %v2763 = vadd.f32 %v2714, %v2762
        %2764 = vmatmul.bf16.gmra.mxu0 %v2502
        %v2765 = vpop.f32.mrf.mxu0
        %v2766 = vadd.f32 %v2717, %v2765
        %v2767 = vpop.f32.mrf.mxu0
        %v2768 = vadd.f32 %v2719, %v2767
        %2769 = vdwg.mxu0
        %2770 = vmatpush.bf16.msra.mxu0 %v2647
        %2771 = vmatpush.bf16.msra.mxu0 %v2646
        %2772 = vmatpush.bf16.msra.mxu0 %v2645
        %2773 = vmatpush.bf16.msra.mxu0 %v2644
        %2774 = vmatpush.bf16.msra.mxu0 %v2643
        %2775 = vmatpush.bf16.msra.mxu0 %v2642
        %2776 = vmatpush.bf16.msra.mxu0 %v2641
        %2777 = vmatpush.bf16.msra.mxu0 %v2640
        %2778 = vmatmul.bf16.gmra.mxu0 %v2482
        %v2779 = vpop.f32.mrf.mxu0
        %v2780 = vadd.f32 %v2731, %v2779
        %v2781 = vpop.f32.mrf.mxu0
        %v2782 = vadd.f32 %v2733, %v2781
        %2783 = vmatmul.bf16.gmra.mxu0 %v2485
        %v2784 = vpop.f32.mrf.mxu0
        %v2785 = vadd.f32 %v2736, %v2784
        %v2786 = vpop.f32.mrf.mxu0
        %v2787 = vadd.f32 %v2738, %v2786
        %2788 = vmatmul.bf16.gmra.mxu0 %v2488
        %v2789 = vpop.f32.mrf.mxu0
        %v2790 = vadd.f32 %v2741, %v2789
        %v2791 = vpop.f32.mrf.mxu0
        %v2792 = vadd.f32 %v2743, %v2791
        %2793 = vmatmul.bf16.gmra.mxu0 %v2491
        %v2794 = vpop.f32.mrf.mxu0
        %v2795 = vadd.f32 %v2746, %v2794
        %v2796 = vpop.f32.mrf.mxu0
        %v2797 = vadd.f32 %v2748, %v2796
        %2798 = vmatmul.bf16.gmra.mxu0 %v2494
        %v2799 = vpop.f32.mrf.mxu0
        %v2800 = vadd.f32 %v2751, %v2799
        %v2801 = vpop.f32.mrf.mxu0
        %v2802 = vadd.f32 %v2753, %v2801
        %2803 = vmatmul.bf16.gmra.mxu0 %v2497
        %v2804 = vpop.f32.mrf.mxu0
        %v2805 = vadd.f32 %v2756, %v2804
        %v2806 = vpop.f32.mrf.mxu0
        %v2807 = vadd.f32 %v2758, %v2806
        %2808 = vmatmul.bf16.gmra.mxu0 %v2500
        %v2809 = vpop.f32.mrf.mxu0
        %v2810 = vadd.f32 %v2761, %v2809
        %v2811 = vpop.f32.mrf.mxu0
        %v2812 = vadd.f32 %v2763, %v2811
        %2813 = vmatmul.bf16.gmra.mxu0 %v2503
        %v2814 = vpop.f32.mrf.mxu0
        %v2815 = vadd.f32 %v2766, %v2814
        %v2816 = vpop.f32.mrf.mxu0
        %v2817 = vadd.f32 %v2768, %v2816
        %2818 = vdwg.mxu0
        %v2819 = vadd.f32 %v2301, %v2780
        %v2820 = vadd.f32 %v2302, %v2782
        %v2821 = vadd.f32 %v2303, %v2785
        %v2822 = vadd.f32 %v2304, %v2787
        %v2823 = vadd.f32 %v2305, %v2790
        %v2824 = vadd.f32 %v2306, %v2792
        %v2825 = vadd.f32 %v2307, %v2795
        %v2826 = vadd.f32 %v2308, %v2797
        %v2827 = vadd.f32 %v2309, %v2800
        %v2828 = vadd.f32 %v2310, %v2802
        %v2829 = vadd.f32 %v2311, %v2805
        %v2830 = vadd.f32 %v2312, %v2807
        %v2831 = vadd.f32 %v2313, %v2810
        %v2832 = vadd.f32 %v2314, %v2812
        %v2833 = vadd.f32 %v2315, %v2815
        %v2834 = vadd.f32 %v2316, %v2817
        %v2835 = vmax.f32 %v2819, 0.0
        %v2836 = vmax.f32 %v2820, 0.0
        %v2837 = vmax.f32 %v2821, 0.0
        %v2838 = vmax.f32 %v2822, 0.0
        %v2839 = vmax.f32 %v2823, 0.0
        %v2840 = vmax.f32 %v2824, 0.0
        %v2841 = vmax.f32 %v2825, 0.0
        %v2842 = vmax.f32 %v2826, 0.0
        %v2843 = vmax.f32 %v2827, 0.0
        %v2844 = vmax.f32 %v2828, 0.0
        %v2845 = vmax.f32 %v2829, 0.0
        %v2846 = vmax.f32 %v2830, 0.0
        %v2847 = vmax.f32 %v2831, 0.0
        %v2848 = vmax.f32 %v2832, 0.0
        %v2849 = vmax.f32 %v2833, 0.0
        %v2850 = vmax.f32 %v2834, 0.0
        %v2851 = vpack.c.bf16 %v2835, %v2835
        %v2852 = vpack.c.bf16 %v2836, %v2836
        %v2853 = vpack.c.bf16 %v2837, %v2837
        %v2854 = vpack.c.bf16 %v2838, %v2838
        %v2855 = vpack.c.bf16 %v2839, %v2839
        %v2856 = vpack.c.bf16 %v2840, %v2840
        %v2857 = vpack.c.bf16 %v2841, %v2841
        %v2858 = vpack.c.bf16 %v2842, %v2842
        %v2859 = vpack.c.bf16 %v2843, %v2843
        %v2860 = vpack.c.bf16 %v2844, %v2844
        %v2861 = vpack.c.bf16 %v2845, %v2845
        %v2862 = vpack.c.bf16 %v2846, %v2846
        %v2863 = vpack.c.bf16 %v2847, %v2847
        %v2864 = vpack.c.bf16 %v2848, %v2848
        %v2865 = vpack.c.bf16 %v2849, %v2849
        %v2866 = vpack.c.bf16 %v2850, %v2850
        %vm2867 = vcmask 519168
        %2868 = vst.msk [vmem:[%s225] sm:$0xf] %vm2867, %v2851
        %2869 = vst.msk [vmem:[%s225 + $0x4] sm:$0xf] %vm2867, %v2852
        %2870 = vst.msk [vmem:[%s225 + $0x8] sm:$0xf] %vm2867, %v2853
        %2871 = vst.msk [vmem:[%s225 + $0xc] sm:$0xf] %vm2867, %v2854
        %2872 = vst.msk [vmem:[%s225 + $0x10] sm:$0xf] %vm2867, %v2855
        %2873 = vst.msk [vmem:[%s225 + $0x14] sm:$0xf] %vm2867, %v2856
        %2874 = vst.msk [vmem:[%s225 + $0x18] sm:$0xf] %vm2867, %v2857
        %2875 = vst.msk [vmem:[%s225 + $0x1c] sm:$0xf] %vm2867, %v2858
        %2876 = vst.msk [vmem:[%s225 + $0x20] sm:$0xf] %vm2867, %v2859
        %2877 = vst.msk [vmem:[%s225 + $0x24] sm:$0xf] %vm2867, %v2860
        %2878 = vst.msk [vmem:[%s225 + $0x28] sm:$0xf] %vm2867, %v2861
        %2879 = vst.msk [vmem:[%s225 + $0x2c] sm:$0xf] %vm2867, %v2862
        %2880 = vst.msk [vmem:[%s225 + $0x30] sm:$0xf] %vm2867, %v2863
        %2881 = vst.msk [vmem:[%s225 + $0x34] sm:$0xf] %vm2867, %v2864
        %2882 = vst.msk [vmem:[%s225 + $0x38] sm:$0xf] %vm2867, %v2865
        %2883 = vst.msk [vmem:[%s225 + $0x3c] sm:$0xf] %vm2867, %v2866
        %s2884 = smul.u32 16, %s26
        %p2885 = scmp.lt.s32.totalorder %s2884, 63
        %s2886 = scalar_select %p2885, %s2884, 63
        %s2887 = smul.addr %s2886, 4
        %s2888 = scalar_lea.vmem %s4, %s2887
        // Predicated region
        $region37: #{tpu_custom_call.1} parent=31 // pred_check
          %p2889 = pneg %p117
        $region38: #{tpu_custom_call.1} parent=31 // pred_check_branch
          %2891 = sbr.rel (%p2889) target = $region40
        $region39: #{tpu_custom_call.1} parent=31 // pred_region
          %s2892 = smul.u32 16, %s26
        $region40: #{tpu_custom_call.1} parent=31 // pred_fallthru
          _
      $region32: #{tpu_custom_call.1} parent=5 // pred_fallthru
        _
      %p2893 = scmp.le.s32.totalorder 2, %s21
      // Predicated region
      $region41: #{tpu_custom_call.1} parent=5 // pred_check
        %p2894 = pneg %p2893
      $region42: #{tpu_custom_call.1} parent=5 // pred_check_branch
        %2896 = sbr.rel (%p2894) target = $region44
      $region43: #{tpu_custom_call.1} parent=5 // pred_region
        %s2897 = ssub.s32 %s21, 2
        // Predicated region
        $region45: #{tpu_custom_call.1} parent=43 // pred_check
          %p2898 = pneg %p123
        $region46: #{tpu_custom_call.1} parent=43 // pred_check_branch
          %2900 = sbr.rel (%p2898) target = $region48
        $region47: #{tpu_custom_call.1} parent=43 // pred_region
          %s2901 = smul.u32 16, %s27
          %p2902 = scmp.lt.s32.totalorder %s2901, 63
          %s2903 = scalar_select %p2902, %s2901, 63
          %s2904 = smul.addr %s2903, 4
          %s2905 = scalar_lea.vmem %s4, %s2904
        $region48: #{tpu_custom_call.1} parent=43 // pred_fallthru
          _
      $region44: #{tpu_custom_call.1} parent=5 // pred_fallthru
        _
    $region6: #{tpu_custom_call.1} parent=1 // loop_footer
      %s25 = sadd.s32 1, %s21
    $region7: #{tpu_custom_call.1} parent=1 // loop_footer_branch
      %20 = sbr.rel target = $region3
    $region8: #{tpu_custom_call.1} parent=1 // loop_exit
      _
    %2906 = vsyncpa [#allocation5], 1
    %s2907 = scalar_lea.sflag [#allocation5], 1
    %2908 = vsyncpa %s2907, 1

</llo_original>
